<compile_context>
chip_gen: v7x
topology: tpu7x:2x2x1
jax: 0.10.0
libtpu: 0.0.40
codegen_flags: <defaults>
</compile_context>

<pallas_src>
import jax
import jax.numpy as jnp
from jax import lax
from jax.experimental import pallas as pl
from jax.experimental.pallas import tpu as pltpu


# ------------------------------ Pallas kernel -------------------------------

def _make_flowstep_kernel(Wp, Lh, Lo, Ch, Cg, hidden, base):
    """Fused actnorm + invconv + additive-coupling kernel.

    Activations are (channels, flat_pixels); the flat pixel index has row
    stride Wp (padded width), so a 3x3 tap (ty, tx) is the static lane shift
    ty*Wp + tx.  `base` is the flat offset of image pixel (0, 0) in the output
    span.  Cg is the (8-aligned) sublane group per conv1 tap.
    """
    offs = [(t // 3) * Wp + (t % 3) for t in range(9)]

    def kernel(x_ref, mz_ref, mh_ref, a_ref, c_ref,
               w1_ref, b1_ref, w2_ref, b2_ref, w3_ref, b3_ref,
               out_ref, zst_ref, hst_ref):
        # --- ActNorm2d + invertible 1x1 conv (scales/bias pre-folded) -------
        # mask_z keeps the spatial halo at exactly zero -> SAME zero padding
        # for the first 3x3 conv of f().
        z = jnp.dot(a_ref[...], x_ref[...], preferred_element_type=jnp.float32)
        z = z + c_ref[...] * mz_ref[...]                          # (C, L0)

        # --- f(z1): Conv3x3, 9 taps K-stacked into ONE MXU matmul -----------
        # Unused rows of each 8-sublane tap group carry zero weight columns,
        # but uninitialised VMEM could be NaN -> zero the scratch every step
        # (cheap, and correct regardless of which TensorCore runs the step).
        if Cg != Ch:
            zst_ref[...] = jnp.zeros_like(zst_ref)
        for t in range(9):
            zst_ref[t * Cg:t * Cg + Ch, :] = z[:Ch, offs[t]:offs[t] + Lh]
        ha = jnp.dot(w1_ref[...], zst_ref[...],
                     preferred_element_type=jnp.float32)          # (hid, Lh)
        ha = jnp.maximum(ha + b1_ref[...], 0.0)

        # --- Conv1x1 -> ReLU (ActNorm scales already folded into w2 / w3) ---
        hb = jnp.dot(w2_ref[...], ha, preferred_element_type=jnp.float32)
        # mask_h zeroes out-of-image pixels -> SAME zero padding for conv3.
        hb = jnp.maximum(hb + b2_ref[...], 0.0) * mh_ref[...]     # (hid, Lh)

        # --- Conv2dZeros 3x3, 9 taps K-stacked into ONE MXU matmul ----------
        for t in range(9):
            hst_ref[t * hidden:(t + 1) * hidden, :] = hb[:, offs[t]:offs[t] + Lo]
        o = jnp.dot(w3_ref[...], hst_ref[...],
                    preferred_element_type=jnp.float32) + b3_ref[...]  # (Ch, Lo)

        # --- additive coupling: direct stores, no concat --------------------
        out_ref[:Ch, :] = z[:Ch, base:base + Lo]
        out_ref[Ch:, :] = z[Ch:, base:base + Lo] + o

    return kernel


# --------------------------------- wrapper ----------------------------------

def init_params(key, C, hidden):
    """Deterministic synthetic parameters (shapes per the module's __init__)."""
    Ch = C // 2
    ks = jax.random.split(key, 12)
    p = {}
    # ActNorm2d(in_channels)
    p['an_bias'] = 0.1 * jax.random.normal(ks[0], (C,), jnp.float32)
    p['an_logs'] = 0.1 * jax.random.normal(ks[1], (C,), jnp.float32)
    # InvertibleConv1x1: random orthogonal CxC
    p['inv_w'] = jnp.linalg.qr(jax.random.normal(ks[2], (C, C), jnp.float32))[0]
    # f: Conv2d(Ch, hidden, 3x3, no bias) + ActNorm
    p['w1'] = 0.05 * jax.random.normal(ks[3], (3, 3, Ch, hidden), jnp.float32)  # HWIO
    p['b1'] = 0.1 * jax.random.normal(ks[4], (hidden,), jnp.float32)
    p['l1'] = 0.1 * jax.random.normal(ks[5], (hidden,), jnp.float32)
    # f: Conv2d(hidden, hidden, 1x1, no bias) + ActNorm
    p['w2'] = 0.05 * jax.random.normal(ks[6], (1, 1, hidden, hidden), jnp.float32)
    p['b2'] = 0.1 * jax.random.normal(ks[7], (hidden,), jnp.float32)
    p['l2'] = 0.1 * jax.random.normal(ks[8], (hidden,), jnp.float32)
    # f: Conv2dZeros(hidden, Ch, 3x3). PyTorch zero-inits these; use small
    # random values so the hot path is exercised.
    p['w3'] = 0.05 * jax.random.normal(ks[9], (3, 3, hidden, Ch), jnp.float32)
    p['b3'] = 0.1 * jax.random.normal(ks[10], (Ch,), jnp.float32)
    p['l3'] = 0.1 * jax.random.normal(ks[11], (Ch,), jnp.float32)
    return p


def flow_step_forward(x_nchw, logdet, p):
    """Matches FlowStep.normal_flow (reverse=False). NCHW in / NCHW out."""
    N, C, H, W = x_nchw.shape
    assert C % 2 == 0
    Ch = C // 2
    hidden = p['b1'].shape[0]
    assert hidden % 8 == 0
    pixels = H * W

    # Flat padded layout: 2-pixel zero halo (two consecutive 3x3 SAME convs),
    # +1 extra bottom row so every static tap slice stays in-bounds.
    Wp = W + 4
    Hp = H + 5
    L0 = Hp * Wp                    # flattened padded image length
    Lo = H * Wp                     # output span (row stride Wp)
    Lh = Lo + 2 * Wp + 2            # hidden-activation span (incl. 1-ring)
    base = 2 * Wp + 2               # flat offset of image pixel (0, 0)'s output
    Cg = ((Ch + 7) // 8) * 8        # 8-aligned sublane group per conv1 tap

    # --- zero-padded, flattened input (single pad; no halo-tile duplication) --
    xp = jnp.pad(x_nchw, ((0, 0), (0, 0), (2, 3), (2, 2))).reshape(N, C, L0)

    # --- validity masks: 1 inside the image, 0 in the zero-pad halo ----------
    rr = jnp.arange(Hp)
    cc = jnp.arange(Wp)
    m2d = (((rr >= 2) & (rr < 2 + H))[:, None]
           & ((cc >= 2) & (cc < 2 + W))[None, :])
    mask_z = m2d.reshape(1, L0).astype(jnp.float32)
    mask_h = mask_z[:, Wp + 1: Wp + 1 + Lh]            # h index m <-> pixel m+Wp+1

    # --- fold all ActNorm scales into neighbouring weights (wrapper-side) ----
    A = p['inv_w'] * jnp.exp(p['an_logs'])[None, :]            # invconv∘scale
    cvec = (A @ p['an_bias']).reshape(C, 1)                    # folded bias term
    # conv1: HWIO -> (hidden, 9*Cg) K-stacked, tap groups zero-padded to Cg.
    w1r = jnp.transpose(p['w1'], (3, 0, 1, 2)).reshape(hidden, 9, Ch)
    w1s = jnp.pad(w1r, ((0, 0), (0, 0), (0, Cg - Ch))).reshape(hidden, 9 * Cg)
    b1 = p['b1'].reshape(hidden, 1)
    # conv2 (1x1): fold exp(l1) into its input columns (ReLU commutes w/ scale).
    w2s = p['w2'][0, 0].T * jnp.exp(p['l1'])[None, :]
    b2 = p['b2'].reshape(hidden, 1)
    # Conv2dZeros: fold exp(l2) (input side) and exp(3*l3) (output side).
    s3 = jnp.exp(3.0 * p['l3'])
    w3f = p['w3'] * jnp.exp(p['l2'])[None, None, :, None] * s3[None, None, None, :]
    w3s = jnp.transpose(w3f, (3, 0, 1, 2)).reshape(Ch, 9 * hidden)
    b3f = (p['b3'] * s3).reshape(Ch, 1)

    # --- VMEM budget derived from the actual footprint (v7x-safe) -----------
    est_bytes = 4 * (
        2 * C * L0 + 2 * C * Lo                 # double-buffered in/out tiles
        + C * L0                                # z
        + 9 * Cg * Lh + 9 * hidden * Lo         # K-stack scratches
        + 2 * hidden * Lh                       # ha / hb
        + L0 + Lh                               # masks
        + C * C + hidden * 9 * Cg + hidden * hidden + Ch * 9 * hidden
        + 3 * hidden)
    vmem_limit = int(min(max(4 * est_bytes, 16 * 2 ** 20), 40 * 2 ** 20))

    def _full(a):
        return pl.BlockSpec(a.shape, lambda n, nd=a.ndim: (0,) * nd)

    out = pl.pallas_call(
        _make_flowstep_kernel(Wp, Lh, Lo, Ch, Cg, hidden, base),
        out_shape=jax.ShapeDtypeStruct((N, C, Lo), jnp.float32),
        grid=(N,),
        in_specs=[
            pl.BlockSpec((None, C, L0), lambda n: (n, 0, 0)),
            _full(mask_z), _full(mask_h), _full(A), _full(cvec),
            _full(w1s), _full(b1), _full(w2s), _full(b2), _full(w3s), _full(b3f),
        ],
        out_specs=pl.BlockSpec((None, C, Lo), lambda n: (n, 0, 0)),
        scratch_shapes=[
            pltpu.VMEM((9 * Cg, Lh), jnp.float32),      # conv1 K-stack
            pltpu.VMEM((9 * hidden, Lo), jnp.float32),  # conv3 K-stack
        ],
        compiler_params=pltpu.CompilerParams(
            dimension_semantics=("parallel",),
            vmem_limit_bytes=vmem_limit),
    )(xp, mask_z, mask_h, A, cvec, w1s, b1, w2s, b2, w3s, b3f)

    # logdet terms (scalars, computed once in the wrapper)
    logdet = logdet + pixels * jnp.sum(p['an_logs'])
    logdet = logdet + pixels * jnp.linalg.slogdet(p['inv_w'])[1]

    # Strip the padded-width garbage columns and reassemble NCHW.
    z_out = out.reshape(N, C, H, Wp)[..., :W]
    return z_out, logdet


# ----------------------- plain-JAX reference (NCHW) -------------------------

def ref_forward(x_nchw, logdet, p):
    N, C, H, W = x_nchw.shape
    Ch = C // 2
    pixels = H * W

    z = (x_nchw + p['an_bias'][None, :, None, None]) * jnp.exp(
        p['an_logs'][None, :, None, None])
    logdet = logdet + pixels * jnp.sum(p['an_logs'])
    z = jnp.einsum('oi,nihw->nohw', p['inv_w'], z)
    logdet = logdet + pixels * jnp.linalg.slogdet(p['inv_w'])[1]

    z1, z2 = z[:, :Ch], z[:, Ch:]

    def conv(x, w_hwio):
        w = jnp.transpose(w_hwio, (3, 2, 0, 1))  # HWIO -> OIHW
        return lax.conv_general_dilated(
            x, w, (1, 1), 'SAME', dimension_numbers=('NCHW', 'OIHW', 'NCHW'))

    h = conv(z1, p['w1'])
    h = (h + p['b1'][None, :, None, None]) * jnp.exp(p['l1'][None, :, None, None])
    h = jnp.maximum(h, 0.0)
    h = conv(h, p['w2'])
    h = (h + p['b2'][None, :, None, None]) * jnp.exp(p['l2'][None, :, None, None])
    h = jnp.maximum(h, 0.0)
    h = conv(h, p['w3'])
    h = (h + p['b3'][None, :, None, None]) * jnp.exp(3.0 * p['l3'][None, :, None, None])
    z2 = z2 + h
    return jnp.concatenate([z1, z2], axis=1), logdet


# ---------------------------------- main ------------------------------------

if __name__ == "__main__":
    key = jax.random.PRNGKey(0)
    kx, kp = jax.random.split(key)
    N, C, H, W, hidden = 2, 4, 16, 16, 32

    x = jax.random.normal(kx, (N, C, H, W), jnp.float32)
    logdet0 = jnp.zeros((N,), jnp.float32)
    params = init_params(kp, C, hidden)

    fwd = jax.jit(flow_step_forward)
    z, logdet = fwd(x, logdet0, params)
    z = jax.block_until_ready(z)
    logdet = jax.block_until_ready(logdet)

    z_ref, logdet_ref = ref_forward(x, logdet0, params)
    assert z.shape == (N, C, H, W) and logdet.shape == (N,)
    max_err = float(jnp.max(jnp.abs(z - z_ref)))
    assert jnp.allclose(z, z_ref, atol=1e-3, rtol=1e-3), max_err
    assert jnp.allclose(logdet, logdet_ref, atol=1e-3, rtol=1e-4)

    print("KERNEL_OK")
</pallas_src>

<mosaic_0001>
module attributes {stable_mosaic.version = 11 : i64} {
  func.func @kernel(%arg0: i32, %arg1: memref<1x4x420xf32, #tpu.memory_space<vmem>>, %arg2: memref<1x420xf32, #tpu.memory_space<vmem>>, %arg3: memref<1x362xf32, #tpu.memory_space<vmem>>, %arg4: memref<4x4xf32, #tpu.memory_space<vmem>>, %arg5: memref<4x1xf32, #tpu.memory_space<vmem>>, %arg6: memref<32x72xf32, #tpu.memory_space<vmem>>, %arg7: memref<32x1xf32, #tpu.memory_space<vmem>>, %arg8: memref<32x32xf32, #tpu.memory_space<vmem>>, %arg9: memref<32x1xf32, #tpu.memory_space<vmem>>, %arg10: memref<2x288xf32, #tpu.memory_space<vmem>>, %arg11: memref<2x1xf32, #tpu.memory_space<vmem>>, %arg12: memref<1x4x320xf32, #tpu.memory_space<vmem>>, %arg13: memref<72x362xf32, #tpu.memory_space<vmem>>, %arg14: memref<288x320xf32, #tpu.memory_space<vmem>>) attributes {dimension_semantics = [#tpu.dimension_semantics<parallel>], iteration_bounds = array<i64: 2>, scalar_prefetch = 0 : i64, scratch_operands = 2 : i64, tpu.core_type = #tpu.core_type<tc>, window_params = [{transform_indices = @transform_0, window_bounds = array<i64: 1, 4, 420>}, {pipeline_mode = #tpu.pipeline_mode<synchronous>, transform_indices = @transform_1, window_bounds = array<i64: 1, 420>}, {pipeline_mode = #tpu.pipeline_mode<synchronous>, transform_indices = @transform_2, window_bounds = array<i64: 1, 362>}, {pipeline_mode = #tpu.pipeline_mode<synchronous>, transform_indices = @transform_3, window_bounds = array<i64: 4, 4>}, {pipeline_mode = #tpu.pipeline_mode<synchronous>, transform_indices = @transform_4, window_bounds = array<i64: 4, 1>}, {pipeline_mode = #tpu.pipeline_mode<synchronous>, transform_indices = @transform_5, window_bounds = array<i64: 32, 72>}, {pipeline_mode = #tpu.pipeline_mode<synchronous>, transform_indices = @transform_6, window_bounds = array<i64: 32, 1>}, {pipeline_mode = #tpu.pipeline_mode<synchronous>, transform_indices = @transform_7, window_bounds = array<i64: 32, 32>}, {pipeline_mode = #tpu.pipeline_mode<synchronous>, transform_indices = @transform_8, window_bounds = array<i64: 32, 1>}, {pipeline_mode = #tpu.pipeline_mode<synchronous>, transform_indices = @transform_9, window_bounds = array<i64: 2, 288>}, {pipeline_mode = #tpu.pipeline_mode<synchronous>, transform_indices = @transform_10, window_bounds = array<i64: 2, 1>}, {transform_indices = @transform_11, window_bounds = array<i64: 1, 4, 320>}]} {
    %c0 = arith.constant 0 : index
    %c0_0 = arith.constant 0 : index
    %0 = vector.load %arg4[%c0, %c0_0] : memref<4x4xf32, #tpu.memory_space<vmem>>, vector<4x4xf32>
    %c0_1 = arith.constant 0 : index
    %c0_2 = arith.constant 0 : index
    %c0_3 = arith.constant 0 : index
    %1 = vector.load %arg1[%c0_1, %c0_2, %c0_3] : memref<1x4x420xf32, #tpu.memory_space<vmem>>, vector<1x4x420xf32>
    %2 = vector.shape_cast %1 : vector<1x4x420xf32> to vector<4x420xf32>
    %cst = arith.constant dense<0.000000e+00> : vector<4x420xf32>
    %3 = tpu.matmul %0, %2, %cst {dimension_numbers = #tpu.dot_dimension_numbers<[1], [0], [0], [1], [0, 0, 1, 1], [], []>} : vector<4x4xf32>, vector<4x420xf32>, vector<4x420xf32> -> vector<4x420xf32>
    %c0_4 = arith.constant 0 : index
    %c0_5 = arith.constant 0 : index
    %4 = vector.load %arg5[%c0_4, %c0_5] : memref<4x1xf32, #tpu.memory_space<vmem>>, vector<4x1xf32>
    %c0_6 = arith.constant 0 : index
    %c0_7 = arith.constant 0 : index
    %5 = vector.load %arg2[%c0_6, %c0_7] : memref<1x420xf32, #tpu.memory_space<vmem>>, vector<1x420xf32>
    %6 = vector.broadcast %4 : vector<4x1xf32> to vector<4x420xf32>
    %7 = vector.broadcast %5 : vector<1x420xf32> to vector<4x420xf32>
    %8 = arith.mulf %6, %7 : vector<4x420xf32>
    %9 = arith.addf %3, %8 : vector<4x420xf32>
    %cst_8 = arith.constant 0.000000e+00 : f32
    %10 = vector.broadcast %cst_8 : f32 to vector<72x362xf32>
    %c0_9 = arith.constant 0 : index
    %c0_10 = arith.constant 0 : index
    %11 = vector.load %arg13[%c0_9, %c0_10] : memref<72x362xf32, #tpu.memory_space<vmem>>, vector<72x362xf32>
    tpu.vector_store %arg13[%c0_9, %c0_10], %10 {strides = array<i32>} : memref<72x362xf32, #tpu.memory_space<vmem>>, vector<72x362xf32>,
    %12 = vector.extract_strided_slice %9 {offsets = [0, 0], sizes = [2, 362], strides = [1, 1]} : vector<4x420xf32> to vector<2x362xf32>
    %c0_11 = arith.constant 0 : index
    %c0_12 = arith.constant 0 : index
    %13 = vector.load %arg13[%c0_11, %c0_12] : memref<72x362xf32, #tpu.memory_space<vmem>>, vector<2x362xf32>
    tpu.vector_store %arg13[%c0_11, %c0_12], %12 {strides = array<i32>} : memref<72x362xf32, #tpu.memory_space<vmem>>, vector<2x362xf32>,
    %14 = vector.extract_strided_slice %9 {offsets = [0, 1], sizes = [2, 362], strides = [1, 1]} : vector<4x420xf32> to vector<2x362xf32>
    %c8 = arith.constant 8 : index
    %c0_13 = arith.constant 0 : index
    %15 = vector.load %arg13[%c8, %c0_13] : memref<72x362xf32, #tpu.memory_space<vmem>>, vector<2x362xf32>
    tpu.vector_store %arg13[%c8, %c0_13], %14 {strides = array<i32>} : memref<72x362xf32, #tpu.memory_space<vmem>>, vector<2x362xf32>,
    %16 = vector.extract_strided_slice %9 {offsets = [0, 2], sizes = [2, 362], strides = [1, 1]} : vector<4x420xf32> to vector<2x362xf32>
    %c16 = arith.constant 16 : index
    %c0_14 = arith.constant 0 : index
    %17 = vector.load %arg13[%c16, %c0_14] : memref<72x362xf32, #tpu.memory_space<vmem>>, vector<2x362xf32>
    tpu.vector_store %arg13[%c16, %c0_14], %16 {strides = array<i32>} : memref<72x362xf32, #tpu.memory_space<vmem>>, vector<2x362xf32>,
    %18 = vector.extract_strided_slice %9 {offsets = [0, 20], sizes = [2, 362], strides = [1, 1]} : vector<4x420xf32> to vector<2x362xf32>
    %c24 = arith.constant 24 : index
    %c0_15 = arith.constant 0 : index
    %19 = vector.load %arg13[%c24, %c0_15] : memref<72x362xf32, #tpu.memory_space<vmem>>, vector<2x362xf32>
    tpu.vector_store %arg13[%c24, %c0_15], %18 {strides = array<i32>} : memref<72x362xf32, #tpu.memory_space<vmem>>, vector<2x362xf32>,
    %20 = vector.extract_strided_slice %9 {offsets = [0, 21], sizes = [2, 362], strides = [1, 1]} : vector<4x420xf32> to vector<2x362xf32>
    %c32 = arith.constant 32 : index
    %c0_16 = arith.constant 0 : index
    %21 = vector.load %arg13[%c32, %c0_16] : memref<72x362xf32, #tpu.memory_space<vmem>>, vector<2x362xf32>
    tpu.vector_store %arg13[%c32, %c0_16], %20 {strides = array<i32>} : memref<72x362xf32, #tpu.memory_space<vmem>>, vector<2x362xf32>,
    %22 = vector.extract_strided_slice %9 {offsets = [0, 22], sizes = [2, 362], strides = [1, 1]} : vector<4x420xf32> to vector<2x362xf32>
    %c40 = arith.constant 40 : index
    %c0_17 = arith.constant 0 : index
    %23 = vector.load %arg13[%c40, %c0_17] : memref<72x362xf32, #tpu.memory_space<vmem>>, vector<2x362xf32>
    tpu.vector_store %arg13[%c40, %c0_17], %22 {strides = array<i32>} : memref<72x362xf32, #tpu.memory_space<vmem>>, vector<2x362xf32>,
    %24 = vector.extract_strided_slice %9 {offsets = [0, 40], sizes = [2, 362], strides = [1, 1]} : vector<4x420xf32> to vector<2x362xf32>
    %c48 = arith.constant 48 : index
    %c0_18 = arith.constant 0 : index
    %25 = vector.load %arg13[%c48, %c0_18] : memref<72x362xf32, #tpu.memory_space<vmem>>, vector<2x362xf32>
    tpu.vector_store %arg13[%c48, %c0_18], %24 {strides = array<i32>} : memref<72x362xf32, #tpu.memory_space<vmem>>, vector<2x362xf32>,
    %26 = vector.extract_strided_slice %9 {offsets = [0, 41], sizes = [2, 362], strides = [1, 1]} : vector<4x420xf32> to vector<2x362xf32>
    %c56 = arith.constant 56 : index
    %c0_19 = arith.constant 0 : index
    %27 = vector.load %arg13[%c56, %c0_19] : memref<72x362xf32, #tpu.memory_space<vmem>>, vector<2x362xf32>
    tpu.vector_store %arg13[%c56, %c0_19], %26 {strides = array<i32>} : memref<72x362xf32, #tpu.memory_space<vmem>>, vector<2x362xf32>,
    %28 = vector.extract_strided_slice %9 {offsets = [0, 42], sizes = [2, 362], strides = [1, 1]} : vector<4x420xf32> to vector<2x362xf32>
    %c64 = arith.constant 64 : index
    %c0_20 = arith.constant 0 : index
    %29 = vector.load %arg13[%c64, %c0_20] : memref<72x362xf32, #tpu.memory_space<vmem>>, vector<2x362xf32>
    tpu.vector_store %arg13[%c64, %c0_20], %28 {strides = array<i32>} : memref<72x362xf32, #tpu.memory_space<vmem>>, vector<2x362xf32>,
    %c0_21 = arith.constant 0 : index
    %c0_22 = arith.constant 0 : index
    %30 = vector.load %arg6[%c0_21, %c0_22] : memref<32x72xf32, #tpu.memory_space<vmem>>, vector<32x72xf32>
    %c0_23 = arith.constant 0 : index
    %c0_24 = arith.constant 0 : index
    %31 = vector.load %arg13[%c0_23, %c0_24] : memref<72x362xf32, #tpu.memory_space<vmem>>, vector<72x362xf32>
    %cst_25 = arith.constant dense<0.000000e+00> : vector<32x362xf32>
    %32 = tpu.matmul %30, %31, %cst_25 {dimension_numbers = #tpu.dot_dimension_numbers<[1], [0], [0], [1], [0, 0, 1, 1], [], []>} : vector<32x72xf32>, vector<72x362xf32>, vector<32x362xf32> -> vector<32x362xf32>
    %c0_26 = arith.constant 0 : index
    %c0_27 = arith.constant 0 : index
    %33 = vector.load %arg7[%c0_26, %c0_27] : memref<32x1xf32, #tpu.memory_space<vmem>>, vector<32x1xf32>
    %34 = vector.broadcast %33 : vector<32x1xf32> to vector<32x362xf32>
    %35 = arith.addf %32, %34 : vector<32x362xf32>
    %cst_28 = arith.constant 0.000000e+00 : f32
    %36 = vector.broadcast %cst_28 : f32 to vector<32x362xf32>
    %37 = arith.maximumf %35, %36 : vector<32x362xf32>
    %c0_29 = arith.constant 0 : index
    %c0_30 = arith.constant 0 : index
    %38 = vector.load %arg8[%c0_29, %c0_30] : memref<32x32xf32, #tpu.memory_space<vmem>>, vector<32x32xf32>
    %cst_31 = arith.constant dense<0.000000e+00> : vector<32x362xf32>
    %39 = tpu.matmul %38, %37, %cst_31 {dimension_numbers = #tpu.dot_dimension_numbers<[1], [0], [0], [1], [0, 0, 1, 1], [], []>} : vector<32x32xf32>, vector<32x362xf32>, vector<32x362xf32> -> vector<32x362xf32>
    %c0_32 = arith.constant 0 : index
    %c0_33 = arith.constant 0 : index
    %40 = vector.load %arg9[%c0_32, %c0_33] : memref<32x1xf32, #tpu.memory_space<vmem>>, vector<32x1xf32>
    %41 = vector.broadcast %40 : vector<32x1xf32> to vector<32x362xf32>
    %42 = arith.addf %39, %41 : vector<32x362xf32>
    %cst_34 = arith.constant 0.000000e+00 : f32
    %43 = vector.broadcast %cst_34 : f32 to vector<32x362xf32>
    %44 = arith.maximumf %42, %43 : vector<32x362xf32>
    %c0_35 = arith.constant 0 : index
    %c0_36 = arith.constant 0 : index
    %45 = vector.load %arg3[%c0_35, %c0_36] : memref<1x362xf32, #tpu.memory_space<vmem>>, vector<1x362xf32>
    %46 = vector.broadcast %45 : vector<1x362xf32> to vector<32x362xf32>
    %47 = arith.mulf %44, %46 : vector<32x362xf32>
    %48 = vector.extract_strided_slice %47 {offsets = [0, 0], sizes = [32, 320], strides = [1, 1]} : vector<32x362xf32> to vector<32x320xf32>
    %c0_37 = arith.constant 0 : index
    %c0_38 = arith.constant 0 : index
    %49 = vector.load %arg14[%c0_37, %c0_38] : memref<288x320xf32, #tpu.memory_space<vmem>>, vector<32x320xf32>
    tpu.vector_store %arg14[%c0_37, %c0_38], %48 {strides = array<i32>} : memref<288x320xf32, #tpu.memory_space<vmem>>, vector<32x320xf32>,
    %50 = vector.extract_strided_slice %47 {offsets = [0, 1], sizes = [32, 320], strides = [1, 1]} : vector<32x362xf32> to vector<32x320xf32>
    %c32_39 = arith.constant 32 : index
    %c0_40 = arith.constant 0 : index
    %51 = vector.load %arg14[%c32_39, %c0_40] : memref<288x320xf32, #tpu.memory_space<vmem>>, vector<32x320xf32>
    tpu.vector_store %arg14[%c32_39, %c0_40], %50 {strides = array<i32>} : memref<288x320xf32, #tpu.memory_space<vmem>>, vector<32x320xf32>,
    %52 = vector.extract_strided_slice %47 {offsets = [0, 2], sizes = [32, 320], strides = [1, 1]} : vector<32x362xf32> to vector<32x320xf32>
    %c64_41 = arith.constant 64 : index
    %c0_42 = arith.constant 0 : index
    %53 = vector.load %arg14[%c64_41, %c0_42] : memref<288x320xf32, #tpu.memory_space<vmem>>, vector<32x320xf32>
    tpu.vector_store %arg14[%c64_41, %c0_42], %52 {strides = array<i32>} : memref<288x320xf32, #tpu.memory_space<vmem>>, vector<32x320xf32>,
    %54 = vector.extract_strided_slice %47 {offsets = [0, 20], sizes = [32, 320], strides = [1, 1]} : vector<32x362xf32> to vector<32x320xf32>
    %c96 = arith.constant 96 : index
    %c0_43 = arith.constant 0 : index
    %55 = vector.load %arg14[%c96, %c0_43] : memref<288x320xf32, #tpu.memory_space<vmem>>, vector<32x320xf32>
    tpu.vector_store %arg14[%c96, %c0_43], %54 {strides = array<i32>} : memref<288x320xf32, #tpu.memory_space<vmem>>, vector<32x320xf32>,
    %56 = vector.extract_strided_slice %47 {offsets = [0, 21], sizes = [32, 320], strides = [1, 1]} : vector<32x362xf32> to vector<32x320xf32>
    %c128 = arith.constant 128 : index
    %c0_44 = arith.constant 0 : index
    %57 = vector.load %arg14[%c128, %c0_44] : memref<288x320xf32, #tpu.memory_space<vmem>>, vector<32x320xf32>
    tpu.vector_store %arg14[%c128, %c0_44], %56 {strides = array<i32>} : memref<288x320xf32, #tpu.memory_space<vmem>>, vector<32x320xf32>,
    %58 = vector.extract_strided_slice %47 {offsets = [0, 22], sizes = [32, 320], strides = [1, 1]} : vector<32x362xf32> to vector<32x320xf32>
    %c160 = arith.constant 160 : index
    %c0_45 = arith.constant 0 : index
    %59 = vector.load %arg14[%c160, %c0_45] : memref<288x320xf32, #tpu.memory_space<vmem>>, vector<32x320xf32>
    tpu.vector_store %arg14[%c160, %c0_45], %58 {strides = array<i32>} : memref<288x320xf32, #tpu.memory_space<vmem>>, vector<32x320xf32>,
    %60 = vector.extract_strided_slice %47 {offsets = [0, 40], sizes = [32, 320], strides = [1, 1]} : vector<32x362xf32> to vector<32x320xf32>
    %c192 = arith.constant 192 : index
    %c0_46 = arith.constant 0 : index
    %61 = vector.load %arg14[%c192, %c0_46] : memref<288x320xf32, #tpu.memory_space<vmem>>, vector<32x320xf32>
    tpu.vector_store %arg14[%c192, %c0_46], %60 {strides = array<i32>} : memref<288x320xf32, #tpu.memory_space<vmem>>, vector<32x320xf32>,
    %62 = vector.extract_strided_slice %47 {offsets = [0, 41], sizes = [32, 320], strides = [1, 1]} : vector<32x362xf32> to vector<32x320xf32>
    %c224 = arith.constant 224 : index
    %c0_47 = arith.constant 0 : index
    %63 = vector.load %arg14[%c224, %c0_47] : memref<288x320xf32, #tpu.memory_space<vmem>>, vector<32x320xf32>
    tpu.vector_store %arg14[%c224, %c0_47], %62 {strides = array<i32>} : memref<288x320xf32, #tpu.memory_space<vmem>>, vector<32x320xf32>,
    %64 = vector.extract_strided_slice %47 {offsets = [0, 42], sizes = [32, 320], strides = [1, 1]} : vector<32x362xf32> to vector<32x320xf32>
    %c256 = arith.constant 256 : index
    %c0_48 = arith.constant 0 : index
    %65 = vector.load %arg14[%c256, %c0_48] : memref<288x320xf32, #tpu.memory_space<vmem>>, vector<32x320xf32>
    tpu.vector_store %arg14[%c256, %c0_48], %64 {strides = array<i32>} : memref<288x320xf32, #tpu.memory_space<vmem>>, vector<32x320xf32>,
    %c0_49 = arith.constant 0 : index
    %c0_50 = arith.constant 0 : index
    %66 = vector.load %arg10[%c0_49, %c0_50] : memref<2x288xf32, #tpu.memory_space<vmem>>, vector<2x288xf32>
    %c0_51 = arith.constant 0 : index
    %c0_52 = arith.constant 0 : index
    %67 = vector.load %arg14[%c0_51, %c0_52] : memref<288x320xf32, #tpu.memory_space<vmem>>, vector<288x320xf32>
    %cst_53 = arith.constant dense<0.000000e+00> : vector<2x320xf32>
    %68 = tpu.matmul %66, %67, %cst_53 {dimension_numbers = #tpu.dot_dimension_numbers<[1], [0], [0], [1], [0, 0, 1, 1], [], []>} : vector<2x288xf32>, vector<288x320xf32>, vector<2x320xf32> -> vector<2x320xf32>
    %c0_54 = arith.constant 0 : index
    %c0_55 = arith.constant 0 : index
    %69 = vector.load %arg11[%c0_54, %c0_55] : memref<2x1xf32, #tpu.memory_space<vmem>>, vector<2x1xf32>
    %70 = vector.broadcast %69 : vector<2x1xf32> to vector<2x320xf32>
    %71 = arith.addf %68, %70 : vector<2x320xf32>
    %72 = vector.extract_strided_slice %9 {offsets = [0, 42], sizes = [2, 320], strides = [1, 1]} : vector<4x420xf32> to vector<2x320xf32>
    %c0_56 = arith.constant 0 : index
    %c0_57 = arith.constant 0 : index
    %c0_58 = arith.constant 0 : index
    %73 = vector.load %arg12[%c0_56, %c0_57, %c0_58] : memref<1x4x320xf32, #tpu.memory_space<vmem>>, vector<1x2x320xf32>
    %74 = vector.shape_cast %73 : vector<1x2x320xf32> to vector<2x320xf32>
    %75 = vector.shape_cast %72 : vector<2x320xf32> to vector<1x2x320xf32>
    tpu.vector_store %arg12[%c0_56, %c0_57, %c0_58], %75 {strides = array<i32>} : memref<1x4x320xf32, #tpu.memory_space<vmem>>, vector<1x2x320xf32>,
    %76 = vector.extract_strided_slice %9 {offsets = [2, 42], sizes = [2, 320], strides = [1, 1]} : vector<4x420xf32> to vector<2x320xf32>
    %77 = arith.addf %76, %71 : vector<2x320xf32>
    %c0_59 = arith.constant 0 : index
    %c2 = arith.constant 2 : index
    %c0_60 = arith.constant 0 : index
    %78 = vector.load %arg12[%c0_59, %c2, %c0_60] : memref<1x4x320xf32, #tpu.memory_space<vmem>>, vector<1x2x320xf32>
    %79 = vector.shape_cast %78 : vector<1x2x320xf32> to vector<2x320xf32>
    %80 = vector.shape_cast %77 : vector<2x320xf32> to vector<1x2x320xf32>
    tpu.vector_store %arg12[%c0_59, %c2, %c0_60], %80 {strides = array<i32>} : memref<1x4x320xf32, #tpu.memory_space<vmem>>, vector<1x2x320xf32>,
    return
  }
  func.func @transform_0(%arg0: i32) -> (i32, i32, i32) {
    %c0_i32 = arith.constant 0 : i32
    %c0_i32_0 = arith.constant 0 : i32
    %c0_i32_1 = arith.constant 0 : i32
    return %arg0, %c0_i32, %c0_i32_0 : i32, i32, i32
  }
  func.func @transform_1(%arg0: i32) -> (i32, i32) {
    %c0_i32 = arith.constant 0 : i32
    %c0_i32_0 = arith.constant 0 : i32
    %c0_i32_1 = arith.constant 0 : i32
    return %c0_i32, %c0_i32_0 : i32, i32
  }
  func.func @transform_2(%arg0: i32) -> (i32, i32) {
    %c0_i32 = arith.constant 0 : i32
    %c0_i32_0 = arith.constant 0 : i32
    %c0_i32_1 = arith.constant 0 : i32
    return %c0_i32, %c0_i32_0 : i32, i32
  }
  func.func @transform_3(%arg0: i32) -> (i32, i32) {
    %c0_i32 = arith.constant 0 : i32
    %c0_i32_0 = arith.constant 0 : i32
    %c0_i32_1 = arith.constant 0 : i32
    return %c0_i32, %c0_i32_0 : i32, i32
  }
  func.func @transform_4(%arg0: i32) -> (i32, i32) {
    %c0_i32 = arith.constant 0 : i32
    %c0_i32_0 = arith.constant 0 : i32
    %c0_i32_1 = arith.constant 0 : i32
    return %c0_i32, %c0_i32_0 : i32, i32
  }
  func.func @transform_5(%arg0: i32) -> (i32, i32) {
    %c0_i32 = arith.constant 0 : i32
    %c0_i32_0 = arith.constant 0 : i32
    %c0_i32_1 = arith.constant 0 : i32
    return %c0_i32, %c0_i32_0 : i32, i32
  }
  func.func @transform_6(%arg0: i32) -> (i32, i32) {
    %c0_i32 = arith.constant 0 : i32
    %c0_i32_0 = arith.constant 0 : i32
    %c0_i32_1 = arith.constant 0 : i32
    return %c0_i32, %c0_i32_0 : i32, i32
  }
  func.func @transform_7(%arg0: i32) -> (i32, i32) {
    %c0_i32 = arith.constant 0 : i32
    %c0_i32_0 = arith.constant 0 : i32
    %c0_i32_1 = arith.constant 0 : i32
    return %c0_i32, %c0_i32_0 : i32, i32
  }
  func.func @transform_8(%arg0: i32) -> (i32, i32) {
    %c0_i32 = arith.constant 0 : i32
    %c0_i32_0 = arith.constant 0 : i32
    %c0_i32_1 = arith.constant 0 : i32
    return %c0_i32, %c0_i32_0 : i32, i32
  }
  func.func @transform_9(%arg0: i32) -> (i32, i32) {
    %c0_i32 = arith.constant 0 : i32
    %c0_i32_0 = arith.constant 0 : i32
    %c0_i32_1 = arith.constant 0 : i32
    return %c0_i32, %c0_i32_0 : i32, i32
  }
  func.func @transform_10(%arg0: i32) -> (i32, i32) {
    %c0_i32 = arith.constant 0 : i32
    %c0_i32_0 = arith.constant 0 : i32
    %c0_i32_1 = arith.constant 0 : i32
    return %c0_i32, %c0_i32_0 : i32, i32
  }
  func.func @transform_11(%arg0: i32) -> (i32, i32, i32) {
    %c0_i32 = arith.constant 0 : i32
    %c0_i32_0 = arith.constant 0 : i32
    %c0_i32_1 = arith.constant 0 : i32
    return %arg0, %c0_i32, %c0_i32_0 : i32, i32, i32
  }
}

</mosaic_0001>

<llo_original>
// kernel: custom-call.2
$region0: #{custom-call.2}
  %s0 = inlined_call_operand.vmem [shape: f32[4,4], index: 0, kind: input, shape index: {}]
  %s1 = inlined_call_operand.vmem [shape: f32[4,4], index: 1, kind: output, shape index: {0}]
  %s2 = inlined_call_operand.hbm [shape: s32[4], index: 2, kind: output, shape index: {1}]
  %s3 = inlined_call_operand.hbm [shape: s32[4], index: 3, kind: output, shape index: {2}]
  %4 = xla_tuple %s1, %s2, %s3
  $region1: #{custom-call.2} parent=0
    #allocation0 [shape = 'u8[4096]{0}', space=vmem, size = 0x1000, scoped, tag = 'operand span for operand 0']
    #allocation1 [shape = 'u8[2048]{0}', space=vmem, size = 0x800, scoped, tag = 'packed  for operand 0']
    #allocation2 [shape = 'u8[4096]{0}', space=vmem, size = 0x1000, scoped, tag = 'operand span for operand 1']
    #allocation3 [shape = 'u8[2048]{0}', space=vmem, size = 0x800, scoped, tag = 'packed  for operand 1']
    #allocation4 [shape = 'u8[4096]{0}', space=vmem, size = 0x1000, scoped, tag = 'operand span for operand 2']
    #allocation5 [shape = 'u8[512]{0}', space=vmem, size = 0x400, scoped, tag = 'packed  for operand 2']
    #allocation6 [shape = 's32[1]{0}', space=sflag, size = 0x4, scoped, tag = 'scoped memory for custom-call.2']
    #allocation7 [shape = 'u8[4096]{0}', space=vmem, size = 0x1000, scoped, tag = 'operand span for operand 3']
    #allocation8 [shape = 'u8[512]{0}', space=vmem, size = 0x400, scoped, tag = 'packed  for operand 3']
    #allocation9 [shape = 's32[1]{0}', space=sflag, size = 0x4, scoped, tag = 'scoped memory for custom-call.2']
    #allocation10 [shape = 's32[4,128]{1,0}', space=vmem, size = 0x1000, scoped, tag = 'scratch for permutations']
    %5 = vsyncpa [#allocation6], 0
    %6 = vsyncpa [#allocation9], 0
    %p8 = scmp.gt.s32.totalorder 4, 0
    // Predicated region
    $region2: #{custom-call.2} parent=1 // pred_check
      %p9 = pneg %p8
    $region3: #{custom-call.2} parent=1 // pred_check_branch
      %11 = sbr.rel (%p9) target = $region5
    $region4: #{custom-call.2} parent=1 // pred_region
      %s12 = sshra.s32 4, 3
      %p13 = scmp.gt.s32.totalorder %s12, 0
      // Predicated region
      $region6: #{custom-call.2} parent=4 // pred_check
        %p14 = pneg %p13
      $region7: #{custom-call.2} parent=4 // pred_check_branch
        %16 = sbr.rel (%p14) target = $region9
      $region8: #{custom-call.2} parent=4 // pred_region
        %s17 = ssub.s32 %s12, 1
        %s18 = smul.u32 %s17, 128
        %s19 = sshra.s32 %s18, 4
        %s20 = scalar_lea.vmem %s0, %s19
        %v21 = vld [vmem:[%s0] sm:$0xff]
        // While loop
        $region10: #{custom-call.2} parent=8 // loop_pre_header
          _
        $region11: #{custom-call.2} parent=8 // loop_header
          %s22 = sphi %s0, %s44
          %s23 = sphi [#allocation1], %s45
          %v24 = vphi %v21, %v46
          %s25 = ssub.s32 %s20, 64
          %p26 = scmp.gt.s32.totalorder %s22, %s25
        $region12: #{custom-call.2} parent=8 // loop_header_branch
          %28 = sbr.rel (%p26) target = $region16
        $region13: #{custom-call.2} parent=8 // loop_body
          %29 = vst [vmem:[%s23] sm:$0xff] %v24
          %v30 = vld [vmem:[%s22 + $0x8] sm:$0xff]
          %31 = vst [vmem:[%s23 + $0x8] sm:$0xff] %v30
          %v32 = vld [vmem:[%s22 + $0x10] sm:$0xff]
          %33 = vst [vmem:[%s23 + $0x10] sm:$0xff] %v32
          %v34 = vld [vmem:[%s22 + $0x18] sm:$0xff]
          %35 = vst [vmem:[%s23 + $0x18] sm:$0xff] %v34
          %v36 = vld [vmem:[%s22 + $0x20] sm:$0xff]
          %37 = vst [vmem:[%s23 + $0x20] sm:$0xff] %v36
          %v38 = vld [vmem:[%s22 + $0x28] sm:$0xff]
          %39 = vst [vmem:[%s23 + $0x28] sm:$0xff] %v38
          %v40 = vld [vmem:[%s22 + $0x30] sm:$0xff]
          %41 = vst [vmem:[%s23 + $0x30] sm:$0xff] %v40
          %v42 = vld [vmem:[%s22 + $0x38] sm:$0xff]
          %43 = vst [vmem:[%s23 + $0x38] sm:$0xff] %v42
        $region14: #{custom-call.2} parent=8 // loop_footer
          %s44 = scalar_lea.vmem %s22, 64
          %s45 = scalar_lea.vmem %s23, 64
          %v46 = vld [vmem:[%s22 + $0x40] sm:$0xff]
        $region15: #{custom-call.2} parent=8 // loop_footer_branch
          %47 = sbr.rel target = $region11
        $region16: #{custom-call.2} parent=8 // loop_exit
          _
        // While loop
        $region17: #{custom-call.2} parent=8 // loop_pre_header
          _
        $region18: #{custom-call.2} parent=8 // loop_header
          %s48 = sphi %s22, %s56
          %s49 = sphi %s23, %s57
          %v50 = vphi %v24, %v50
          %p51 = scmp.gt.s32.totalorder %s48, %s20
        $region19: #{custom-call.2} parent=8 // loop_header_branch
          %53 = sbr.rel (%p51) target = $region23
        $region20: #{custom-call.2} parent=8 // loop_body
          %v54 = vld [vmem:[%s48] sm:$0xff]
          %55 = vst [vmem:[%s49] sm:$0xff] %v54
        $region21: #{custom-call.2} parent=8 // loop_footer
          %s56 = scalar_lea.vmem %s48, 8
          %s57 = scalar_lea.vmem %s49, 8
        $region22: #{custom-call.2} parent=8 // loop_footer_branch
          %58 = sbr.rel target = $region18
        $region23: #{custom-call.2} parent=8 // loop_exit
          _
      $region9: #{custom-call.2} parent=4 // pred_fallthru
        _
      %s59 = sand.u32 4, 7
      %s60 = sshllo.u32 0, %s59
      %s61 = smul.u32 %s12, 128
      %s62 = sshra.s32 %s61, 4
      %s63 = scalar_lea.vmem [#allocation1], %s62
      %s64 = smul.u32 %s12, 128
      %s65 = sshra.s32 %s64, 4
      %s66 = scalar_lea.vmem %s0, %s65
      %v67 = vld [vmem:[%s66] sm:%s60]
      %68 = vst [vmem:[%s63] sm:%s60] %v67
    $region5: #{custom-call.2} parent=1 // pred_fallthru
      _
    %s70 = sshllo.u32 0, 4
    %v71 = vld [vmem:[#allocation1] sm:%s70]
    %72 = vst [vmem:[#allocation0] sm:%s70] %v71
    %v73 = vld [vmem:[#allocation0] sm:$0xff]
    %74 = vst [vmem:[#allocation2] sm:$0xff] %v73
    %75 = vst [vmem:[#allocation4] sm:$0x1] 0
    %v76 = vlaneseq
    %v77 = vshrl.u32 %v76, 7
    %v78 = vmov %v77
    %80 = vst [vmem:[#allocation10] sm:$0xff] %v78
    loop: start=0, step=1, limit=4
    $region25: #{custom-call.2} parent=1 // loop_pre_header
      _
    $region26: #{custom-call.2} parent=1 // loop_header
      %s82 = sphi 0, %s86
      %p83 = scmp.ge.s32.totalorder %s82, 4
    $region27: #{custom-call.2} parent=1 // loop_header_branch
      %85 = sbr.rel (%p83) target = $region31
    $region28: #{custom-call.2} parent=1 // loop_body
      %v87 = vstv %s82
      %v88 = vlaneseq
      %v89 = vshrl.u32 %v88, 7
      %v90 = vmov %v89
      %v91 = vld [vmem:[#allocation2] sm:$0xff]
      %v92 = vand.u32 2147483647, %v91
      %v94 = vstv %s82
      %vm95 = vcmp.ge.s32.totalorder %v90, %v94
      %vm96 = vcmp.lt.s32.totalorder %v90, 4
      %vm97 = vmand %vm95, %vm96
      %vm98 = vcmp.lt.f32.partialorder -inf, %v92
      %vm99 = vmand %vm97, %vm98
      %v100 = vsel %vm99, %v90, %v87
      %v101 = vsel %vm99, %v92, -inf
      %v102 = vrot.slane %v101, 1
      %v103 = vrot.slane %v100, 1
      %vm104 = vcmp.ge.f32.partialorder %v102, %v101
      %v105 = vsel %vm104, %v102, %v101
      %v106 = vsel %vm104, %v103, %v100
      %v107 = vrot.slane %v102, 1
      %v108 = vrot.slane %v103, 1
      %vm109 = vcmp.ge.f32.partialorder %v107, %v105
      %v110 = vsel %vm109, %v107, %v105
      %v111 = vsel %vm109, %v108, %v106
      %v112 = vrot.slane %v107, 1
      %v113 = vrot.slane %v108, 1
      %vm114 = vcmp.ge.f32.partialorder %v112, %v110
      %v115 = vsel %vm114, %v112, %v110
      %v116 = vsel %vm114, %v113, %v111
      %v117 = vrot.slane %v112, 1
      %v118 = vrot.slane %v113, 1
      %vm119 = vcmp.ge.f32.partialorder %v117, %v115
      %v120 = vsel %vm119, %v117, %v115
      %v121 = vsel %vm119, %v118, %v116
      %v122 = vrot.slane %v117, 1
      %v123 = vrot.slane %v118, 1
      %vm124 = vcmp.ge.f32.partialorder %v122, %v120
      %v125 = vsel %vm124, %v122, %v120
      %v126 = vsel %vm124, %v123, %v121
      %v127 = vrot.slane %v122, 1
      %v128 = vrot.slane %v123, 1
      %vm129 = vcmp.ge.f32.partialorder %v127, %v125
      %v130 = vsel %vm129, %v127, %v125
      %v131 = vsel %vm129, %v128, %v126
      %v132 = vrot.slane %v127, 1
      %v133 = vrot.slane %v128, 1
      %vm134 = vcmp.ge.f32.partialorder %v132, %v130
      %v135 = vsel %vm134, %v132, %v130
      %v136 = vsel %vm134, %v133, %v131
      %s137 = ssub.s32 128, %s82
      %138 = vrot.lane.b32.xlu0 %v136, %s137
      %v139 = vpop.permute.xlu0 %138
      %s140 = vtos %v139
      %v141 = vstv %s82
      %v142 = vlaneseq
      %v143 = vand.u32 %v142, 127
      %vm144 = vcmp.eq.s32.totalorder %v143, %v141
      %v145 = vstv %s140
      %v146 = vld [vmem:[#allocation4] ss:$0 sm:$0xff]
      %v147 = vsel %vm144, %v145, %v146
      %148 = vst [vmem:[#allocation4] sm:$0x1] %v147
      %s149 = scalar_lea.vmem [#allocation2], %s82
      %s150 = scalar_lea.vmem [#allocation2], %s140
      %v151 = vld [vmem:[%s149] ss:$0 sm:$0xff]
      %v152 = vld [vmem:[%s150] ss:$0 sm:$0xff]
      %153 = vst [vmem:[%s150] sm:$0x1] %v151
      %154 = vst [vmem:[%s149] sm:$0x1] %v152
      %s155 = scalar_lea.vmem [#allocation10], %s82
      %s156 = scalar_lea.vmem [#allocation10], %s140
      %v157 = vld [vmem:[%s155] ss:$0 sm:$0xff]
      %v158 = vld [vmem:[%s156] ss:$0 sm:$0xff]
      %159 = vst [vmem:[%s156] sm:$0x1] %v157
      %160 = vst [vmem:[%s155] sm:$0x1] %v158
      %vm161 = vcmp.ne.f32.partialorder %v152, 0.0
      %vm162 = vmand %vm144, %vm161
      %v163 = vsel %vm162, %v152, 1.0
      %v164 = vlaneseq
      %v165 = vand.u32 %v164, 127
      %v166 = vstv %s82
      %vm167 = vcmp.gt.s32.totalorder %v165, %v166
      %v168 = vsel %vm167, %v152, 0.0
      %v169 = vlaneseq
      %v170 = vshrl.u32 %v169, 7
      %v171 = vmov %v170
      %v172 = vld [vmem:[#allocation2] sm:$0xff]
      %v174 = vstv %s82
      %vm175 = vcmp.gt.s32.totalorder %v171, %v174
      %v176 = vsel %vm175, %v163, 1.0
      %v177 = vrcp.pop %v176
      %v178 = vmul.f32 %v172, %v177
      %vm179 = vmand %vm175, %vm144
      %v180 = vsel %vm179, %v178, 0.0
      %181 = vadd.xlane.f32.xlu0 %v180
      %v182 = vpop.xlane.xlu0 %181
      %v183 = vmul.f32 %v182, %v168
      %v184 = vsub.f32 %v178, %v183
      %185 = vst [vmem:[#allocation2] sm:$0xff] %v184
    $region29: #{custom-call.2} parent=1 // loop_footer
      %s86 = sadd.s32 1, %s82
    $region30: #{custom-call.2} parent=1 // loop_footer_branch
      %81 = sbr.rel target = $region26
    $region31: #{custom-call.2} parent=1 // loop_exit
      _
    %v186 = vld [vmem:[#allocation10] sm:$0xff]
    %s187 = scalar_lea.vmem [#allocation10], 8
    %s188 = scalar_lea.vmem [#allocation10], 16
    %s189 = scalar_lea.vmem [#allocation10], 24
    %s190 = scalar_lea.vmem [#allocation10], 32
    %s191 = scalar_lea.vmem [#allocation10], 40
    %s192 = scalar_lea.vmem [#allocation10], 48
    %s193 = scalar_lea.vmem [#allocation10], 56
    %s194 = scalar_lea.vmem [#allocation10], 64
    %s195 = scalar_lea.vmem [#allocation10], 72
    %s196 = scalar_lea.vmem [#allocation10], 80
    %s197 = scalar_lea.vmem [#allocation10], 88
    %s198 = scalar_lea.vmem [#allocation10], 96
    %s199 = scalar_lea.vmem [#allocation10], 104
    %s200 = scalar_lea.vmem [#allocation10], 112
    %s201 = scalar_lea.vmem [#allocation10], 120
    %202 = vxpose.xlu0.b32.start [1/16] %v186, 128
    %203 = vxpose.xlu0.b32.cont [2/16] 0, 128
    %204 = vxpose.xlu0.b32.cont [3/16] 0, 128
    %205 = vxpose.xlu0.b32.cont [4/16] 0, 128
    %206 = vxpose.xlu0.b32.cont [5/16] 0, 128
    %207 = vxpose.xlu0.b32.cont [6/16] 0, 128
    %208 = vxpose.xlu0.b32.cont [7/16] 0, 128
    %209 = vxpose.xlu0.b32.cont [8/16] 0, 128
    %210 = vxpose.xlu0.b32.cont [9/16] 0, 128
    %211 = vxpose.xlu0.b32.cont [10/16] 0, 128
    %212 = vxpose.xlu0.b32.cont [11/16] 0, 128
    %213 = vxpose.xlu0.b32.cont [12/16] 0, 128
    %214 = vxpose.xlu0.b32.cont [13/16] 0, 128
    %215 = vxpose.xlu0.b32.cont [14/16] 0, 128
    %216 = vxpose.xlu0.b32.cont [15/16] 0, 128
    %217 = vxpose.xlu0.b32.end [16/16] 0, 128
    %v218 = vpop.trf.xlu0
    %v219 = vpop.trf.xlu0
    %v220 = vpop.trf.xlu0
    %v221 = vpop.trf.xlu0
    %v222 = vpop.trf.xlu0
    %v223 = vpop.trf.xlu0
    %v224 = vpop.trf.xlu0
    %v225 = vpop.trf.xlu0
    %v226 = vpop.trf.xlu0
    %v227 = vpop.trf.xlu0
    %v228 = vpop.trf.xlu0
    %v229 = vpop.trf.xlu0
    %v230 = vpop.trf.xlu0
    %v231 = vpop.trf.xlu0
    %v232 = vpop.trf.xlu0
    %v233 = vpop.trf.xlu0
    %234 = vst [vmem:[#allocation7] sm:$0x1] %v218
    %s236 = sshllo.u32 0, 4
    %v238 = vld [vmem:[#allocation2] sm:%s236]
    %s239 = sshllo.u32 0, 4
    %240 = vst [vmem:[#allocation3] sm:%s239] %v238
    %s242 = sshllo.u32 0, 1
    %v244 = vld [vmem:[#allocation4] sm:%s242]
    %s245 = sshllo.u32 0, 1
    %246 = vst [vmem:[#allocation5] sm:%s245] %v244
    %s248 = sshllo.u32 0, 1
    %v250 = vld [vmem:[#allocation7] sm:%s248]
    %s251 = sshllo.u32 0, 1
    %252 = vst [vmem:[#allocation8] sm:%s251] %v250
    %p254 = scmp.gt.s32.totalorder 4, 0
    // Predicated region
    $region32: #{custom-call.2} parent=1 // pred_check
      %p255 = pneg %p254
    $region33: #{custom-call.2} parent=1 // pred_check_branch
      %257 = sbr.rel (%p255) target = $region35
    $region34: #{custom-call.2} parent=1 // pred_region
      %s258 = sshra.s32 4, 3
      %p259 = scmp.gt.s32.totalorder %s258, 0
      // Predicated region
      $region36: #{custom-call.2} parent=34 // pred_check
        %p260 = pneg %p259
      $region37: #{custom-call.2} parent=34 // pred_check_branch
        %262 = sbr.rel (%p260) target = $region39
      $region38: #{custom-call.2} parent=34 // pred_region
        %s263 = ssub.s32 %s258, 1
        %s264 = smul.u32 %s263, 128
        %s265 = sshra.s32 %s264, 4
        %s266 = scalar_lea.vmem [#allocation3], %s265
        %v267 = vld [vmem:[#allocation3] sm:$0xff]
        // While loop
        $region40: #{custom-call.2} parent=38 // loop_pre_header
          _
        $region41: #{custom-call.2} parent=38 // loop_header
          %s268 = sphi [#allocation3], %s290
          %s269 = sphi %s1, %s291
          %v270 = vphi %v267, %v292
          %s271 = ssub.s32 %s266, 64
          %p272 = scmp.gt.s32.totalorder %s268, %s271
        $region42: #{custom-call.2} parent=38 // loop_header_branch
          %274 = sbr.rel (%p272) target = $region46
        $region43: #{custom-call.2} parent=38 // loop_body
          %275 = vst [vmem:[%s269] sm:$0xff] %v270
          %v276 = vld [vmem:[%s268 + $0x8] sm:$0xff]
          %277 = vst [vmem:[%s269 + $0x8] sm:$0xff] %v276
          %v278 = vld [vmem:[%s268 + $0x10] sm:$0xff]
          %279 = vst [vmem:[%s269 + $0x10] sm:$0xff] %v278
          %v280 = vld [vmem:[%s268 + $0x18] sm:$0xff]
          %281 = vst [vmem:[%s269 + $0x18] sm:$0xff] %v280
          %v282 = vld [vmem:[%s268 + $0x20] sm:$0xff]
          %283 = vst [vmem:[%s269 + $0x20] sm:$0xff] %v282
          %v284 = vld [vmem:[%s268 + $0x28] sm:$0xff]
          %285 = vst [vmem:[%s269 + $0x28] sm:$0xff] %v284
          %v286 = vld [vmem:[%s268 + $0x30] sm:$0xff]
          %287 = vst [vmem:[%s269 + $0x30] sm:$0xff] %v286
          %v288 = vld [vmem:[%s268 + $0x38] sm:$0xff]
          %289 = vst [vmem:[%s269 + $0x38] sm:$0xff] %v288
        $region44: #{custom-call.2} parent=38 // loop_footer
          %s290 = scalar_lea.vmem %s268, 64
          %s291 = scalar_lea.vmem %s269, 64
          %v292 = vld [vmem:[%s268 + $0x40] sm:$0xff]
        $region45: #{custom-call.2} parent=38 // loop_footer_branch
          %293 = sbr.rel target = $region41
        $region46: #{custom-call.2} parent=38 // loop_exit
          _
        // While loop
        $region47: #{custom-call.2} parent=38 // loop_pre_header
          _
        $region48: #{custom-call.2} parent=38 // loop_header
          %s294 = sphi %s268, %s302
          %s295 = sphi %s269, %s303
          %v296 = vphi %v270, %v296
          %p297 = scmp.gt.s32.totalorder %s294, %s266
        $region49: #{custom-call.2} parent=38 // loop_header_branch
          %299 = sbr.rel (%p297) target = $region53
        $region50: #{custom-call.2} parent=38 // loop_body
          %v300 = vld [vmem:[%s294] sm:$0xff]
          %301 = vst [vmem:[%s295] sm:$0xff] %v300
        $region51: #{custom-call.2} parent=38 // loop_footer
          %s302 = scalar_lea.vmem %s294, 8
          %s303 = scalar_lea.vmem %s295, 8
        $region52: #{custom-call.2} parent=38 // loop_footer_branch
          %304 = sbr.rel target = $region48
        $region53: #{custom-call.2} parent=38 // loop_exit
          _
      $region39: #{custom-call.2} parent=34 // pred_fallthru
        _
      %s305 = sand.u32 4, 7
      %s306 = sshllo.u32 0, %s305
      %s307 = smul.u32 %s258, 128
      %s308 = sshra.s32 %s307, 4
      %s309 = scalar_lea.vmem %s1, %s308
      %s310 = smul.u32 %s258, 128
      %s311 = sshra.s32 %s310, 4
      %s312 = scalar_lea.vmem [#allocation3], %s311
      %v313 = vld [vmem:[%s312] sm:%s306]
      %314 = vst [vmem:[%s309] sm:%s306] %v313
    $region35: #{custom-call.2} parent=1 // pred_fallthru
      _
    // Predicated region
    $region54: #{custom-call.2} parent=1 // pred_check
      _
    $region55: #{custom-call.2} parent=1 // pred_check_branch
      %316 = sbr.rel (0) target = $region57
    $region56: #{custom-call.2} parent=1 // pred_region
      %s318 = ssub.s32 16, 16
      %319 = vsyncadd [#allocation6], %s318
      %s320 = sshll.u32 [#allocation5], 4
      %s321 = int_to_ptr.vmem [resolvable:$true] %s320
      %323 = dma.vmem_to_hbm [thread:$0]  %s321, 16, %s2, [#allocation6]
    $region57: #{custom-call.2} parent=1 // pred_fallthru
      _
    // Predicated region
    $region58: #{custom-call.2} parent=1 // pred_check
      _
    $region59: #{custom-call.2} parent=1 // pred_check_branch
      %325 = sbr.rel (0) target = $region61
    $region60: #{custom-call.2} parent=1 // pred_region
      %s327 = ssub.s32 16, 16
      %328 = vsyncadd [#allocation9], %s327
      %s329 = sshll.u32 [#allocation8], 4
      %s330 = int_to_ptr.vmem [resolvable:$true] %s329
      %332 = dma.vmem_to_hbm [thread:$0]  %s330, 16, %s3, [#allocation9]
    $region61: #{custom-call.2} parent=1 // pred_fallthru
      _
    // Predicated region
    $region62: #{custom-call.2} parent=1 // pred_check
      _
    $region63: #{custom-call.2} parent=1 // pred_check_branch
      %334 = sbr.rel (0) target = $region65
    $region64: #{custom-call.2} parent=1 // pred_region
      %335 = dma.done [#allocation6], 16
    $region65: #{custom-call.2} parent=1 // pred_fallthru
      _
    // Predicated region
    $region66: #{custom-call.2} parent=1 // pred_check
      _
    $region67: #{custom-call.2} parent=1 // pred_check_branch
      %337 = sbr.rel (0) target = $region69
    $region68: #{custom-call.2} parent=1 // pred_region
      %338 = dma.done [#allocation9], 16
    $region69: #{custom-call.2} parent=1 // pred_fallthru
      _
    %339 = vsyncpa [#allocation6], 1
    %340 = vsyncpa [#allocation9], 1

// kernel: flow_step_forward.1
$region0: #{flow_step_forward.1}
  #allocation0 [shape = 'u32[]', space=smem, size = 0x4, offset = 0x4, fixed_abs, tag = 'smem constant byte address 0x4 - core index']
  #allocation1 [shape = 'u32[144,128]{1,0:T(1,128)}', space=vmem, size = 0x12000, scoped, tag = 'internal scratch']
  #allocation2 [shape = 'f32[72,362]{1,0:T(8,128)}', space=vmem, size = 0x1b000, scoped, tag = 'scratch operand']
  #allocation3 [shape = 'f32[288,320]{1,0:T(8,128)}', space=vmem, size = 0x6c000, scoped, tag = 'scratch operand']
  %s0 = inlined_call_operand.vmem [shape: f32[2,4,420], index: 0, kind: input, shape index: {}]
  %s1 = inlined_call_operand.vmem [shape: f32[1,420], index: 1, kind: input, shape index: {}]
  %s2 = inlined_call_operand.vmem [shape: f32[1,362], index: 2, kind: input, shape index: {}]
  %s3 = inlined_call_operand.vmem [shape: f32[4,4], index: 3, kind: input, shape index: {}]
  %s4 = inlined_call_operand.vmem [shape: f32[4,1], index: 4, kind: input, shape index: {}]
  %s5 = inlined_call_operand.vmem [shape: f32[32,72], index: 5, kind: input, shape index: {}]
  %s6 = inlined_call_operand.vmem [shape: f32[32,1], index: 6, kind: input, shape index: {}]
  %s7 = inlined_call_operand.vmem [shape: f32[32,32], index: 7, kind: input, shape index: {}]
  %s8 = inlined_call_operand.vmem [shape: f32[32,1], index: 8, kind: input, shape index: {}]
  %s9 = inlined_call_operand.vmem [shape: f32[2,288], index: 9, kind: input, shape index: {}]
  %s10 = inlined_call_operand.vmem [shape: f32[2,1], index: 10, kind: input, shape index: {}]
  %s11 = inlined_call_operand.vmem [shape: f32[2,4,320], index: 11, kind: output, shape index: {}]
  %s12 = sld [smem:[#allocation0]]
  $region77: #{flow_step_forward.1} parent=0
    _
  %s14 = ssub.s32 1, %s12
  %s15 = scalar_select 0, %s14, %s12
  loop: start=0, step=1, limit=4
  $region2: #{flow_step_forward.1} parent=0 // loop_pre_header
    _
  $region3: #{flow_step_forward.1} parent=0 // loop_header
    %s17 = sphi 0, %s21
    %p18 = scmp.ge.s32.totalorder %s17, 4
    %s27 = sphi 0, %s29
    %s30 = sphi 0, %s27
    %s31 = sphi 0, %s30
    %s47 = sphi 0, %s31
    %s51 = sphi 0, %s51
    %s53 = sphi 0, %s51
    %s54 = sphi 0, %s53
    %s68 = sphi 0, %s54
    %s72 = sphi 0, %s72
    %s74 = sphi 0, %s72
    %s75 = sphi 0, %s74
    %s89 = sphi 0, %s75
    %s93 = sphi 0, %s93
    %s95 = sphi 0, %s93
    %s96 = sphi 0, %s95
    %s110 = sphi 0, %s96
    %s114 = sphi 0, %s114
    %s116 = sphi 0, %s114
    %s117 = sphi 0, %s116
    %s131 = sphi 0, %s117
    %s135 = sphi 0, %s135
    %s137 = sphi 0, %s135
    %s138 = sphi 0, %s137
    %s152 = sphi 0, %s138
    %s156 = sphi 0, %s156
    %s158 = sphi 0, %s156
    %s159 = sphi 0, %s158
    %s173 = sphi 0, %s159
    %s177 = sphi 0, %s177
    %s179 = sphi 0, %s177
    %s180 = sphi 0, %s179
    %s194 = sphi 0, %s180
    %s198 = sphi 0, %s198
    %s200 = sphi 0, %s198
    %s201 = sphi 0, %s200
    %s215 = sphi 0, %s201
    %s219 = sphi 0, %s219
    %s221 = sphi 0, %s219
    %s222 = sphi 0, %s221
    %s236 = sphi 0, %s222
    %s240 = sphi 0, %s240
    %s242 = sphi 0, %s240
    %s243 = sphi 0, %s242
    %s257 = sphi 0, %s243
    %s263 = sphi 0, %s265
    %s266 = sphi 0, %s263
    %s267 = sphi 0, %s266
    %s283 = sphi 0, %s267
  $region4: #{flow_step_forward.1} parent=0 // loop_header_branch
    %20 = sbr.rel (%p18) target = $region8
  $region5: #{flow_step_forward.1} parent=0 // loop_body
    %s22 = ssub.s32 %s17, 1
    %s23 = ssub.s32 %s17, 2
    %s24 = sadd.s32 %s17, 1
    %s25 = ssub.s32 %s17, %s24
    %p26 = scmp.eq.s32.totalorder %s25, 0
    %s28 = sadd.s32 %s27, 1
    %s29 = scalar_select %p26, %s27, %s28
    %p32 = pneg %p26
    %p33 = scmp.eq.s32.totalorder %s17, 1
    %p34 = por %p32, %p33
    %p35 = scmp.ne.s32.totalorder %s27, %s30
    %p36 = scmp.eq.s32.totalorder %s17, 0
    %p37 = por %p35, %p36
    %p38 = scmp.ne.s32.totalorder %s27, %s30
    %p39 = scmp.eq.s32.totalorder %s22, 1
    %p40 = por %p38, %p39
    %p41 = scmp.ne.s32.totalorder %s30, %s31
    %p42 = scmp.eq.s32.totalorder %s22, 0
    %p43 = por %p41, %p42
    %p44 = scmp.ne.s32.totalorder %s30, %s31
    %p45 = scmp.eq.s32.totalorder %s23, 1
    %p46 = por %p44, %p45
    %p48 = scmp.ne.s32.totalorder %s31, %s47
    %p49 = scmp.eq.s32.totalorder %s23, 0
    %p50 = por %p48, %p49
    %s52 = sadd.s32 %s51, 1
    %p55 = scmp.eq.s32.totalorder %s17, 1
    %p56 = scmp.ne.s32.totalorder %s51, %s53
    %p57 = scmp.eq.s32.totalorder %s17, 0
    %p58 = por %p56, %p57
    %p59 = scmp.ne.s32.totalorder %s51, %s53
    %p60 = scmp.eq.s32.totalorder %s22, 1
    %p61 = por %p59, %p60
    %p62 = scmp.ne.s32.totalorder %s53, %s54
    %p63 = scmp.eq.s32.totalorder %s22, 0
    %p64 = por %p62, %p63
    %p65 = scmp.ne.s32.totalorder %s53, %s54
    %p66 = scmp.eq.s32.totalorder %s23, 1
    %p67 = por %p65, %p66
    %p69 = scmp.ne.s32.totalorder %s54, %s68
    %p70 = scmp.eq.s32.totalorder %s23, 0
    %p71 = por %p69, %p70
    %s73 = sadd.s32 %s72, 1
    %p76 = scmp.eq.s32.totalorder %s17, 1
    %p77 = scmp.ne.s32.totalorder %s72, %s74
    %p78 = scmp.eq.s32.totalorder %s17, 0
    %p79 = por %p77, %p78
    %p80 = scmp.ne.s32.totalorder %s72, %s74
    %p81 = scmp.eq.s32.totalorder %s22, 1
    %p82 = por %p80, %p81
    %p83 = scmp.ne.s32.totalorder %s74, %s75
    %p84 = scmp.eq.s32.totalorder %s22, 0
    %p85 = por %p83, %p84
    %p86 = scmp.ne.s32.totalorder %s74, %s75
    %p87 = scmp.eq.s32.totalorder %s23, 1
    %p88 = por %p86, %p87
    %p90 = scmp.ne.s32.totalorder %s75, %s89
    %p91 = scmp.eq.s32.totalorder %s23, 0
    %p92 = por %p90, %p91
    %s94 = sadd.s32 %s93, 1
    %p97 = scmp.eq.s32.totalorder %s17, 1
    %p98 = scmp.ne.s32.totalorder %s93, %s95
    %p99 = scmp.eq.s32.totalorder %s17, 0
    %p100 = por %p98, %p99
    %p101 = scmp.ne.s32.totalorder %s93, %s95
    %p102 = scmp.eq.s32.totalorder %s22, 1
    %p103 = por %p101, %p102
    %p104 = scmp.ne.s32.totalorder %s95, %s96
    %p105 = scmp.eq.s32.totalorder %s22, 0
    %p106 = por %p104, %p105
    %p107 = scmp.ne.s32.totalorder %s95, %s96
    %p108 = scmp.eq.s32.totalorder %s23, 1
    %p109 = por %p107, %p108
    %p111 = scmp.ne.s32.totalorder %s96, %s110
    %p112 = scmp.eq.s32.totalorder %s23, 0
    %p113 = por %p111, %p112
    %s115 = sadd.s32 %s114, 1
    %p118 = scmp.eq.s32.totalorder %s17, 1
    %p119 = scmp.ne.s32.totalorder %s114, %s116
    %p120 = scmp.eq.s32.totalorder %s17, 0
    %p121 = por %p119, %p120
    %p122 = scmp.ne.s32.totalorder %s114, %s116
    %p123 = scmp.eq.s32.totalorder %s22, 1
    %p124 = por %p122, %p123
    %p125 = scmp.ne.s32.totalorder %s116, %s117
    %p126 = scmp.eq.s32.totalorder %s22, 0
    %p127 = por %p125, %p126
    %p128 = scmp.ne.s32.totalorder %s116, %s117
    %p129 = scmp.eq.s32.totalorder %s23, 1
    %p130 = por %p128, %p129
    %p132 = scmp.ne.s32.totalorder %s117, %s131
    %p133 = scmp.eq.s32.totalorder %s23, 0
    %p134 = por %p132, %p133
    %s136 = sadd.s32 %s135, 1
    %p139 = scmp.eq.s32.totalorder %s17, 1
    %p140 = scmp.ne.s32.totalorder %s135, %s137
    %p141 = scmp.eq.s32.totalorder %s17, 0
    %p142 = por %p140, %p141
    %p143 = scmp.ne.s32.totalorder %s135, %s137
    %p144 = scmp.eq.s32.totalorder %s22, 1
    %p145 = por %p143, %p144
    %p146 = scmp.ne.s32.totalorder %s137, %s138
    %p147 = scmp.eq.s32.totalorder %s22, 0
    %p148 = por %p146, %p147
    %p149 = scmp.ne.s32.totalorder %s137, %s138
    %p150 = scmp.eq.s32.totalorder %s23, 1
    %p151 = por %p149, %p150
    %p153 = scmp.ne.s32.totalorder %s138, %s152
    %p154 = scmp.eq.s32.totalorder %s23, 0
    %p155 = por %p153, %p154
    %s157 = sadd.s32 %s156, 1
    %p160 = scmp.eq.s32.totalorder %s17, 1
    %p161 = scmp.ne.s32.totalorder %s156, %s158
    %p162 = scmp.eq.s32.totalorder %s17, 0
    %p163 = por %p161, %p162
    %p164 = scmp.ne.s32.totalorder %s156, %s158
    %p165 = scmp.eq.s32.totalorder %s22, 1
    %p166 = por %p164, %p165
    %p167 = scmp.ne.s32.totalorder %s158, %s159
    %p168 = scmp.eq.s32.totalorder %s22, 0
    %p169 = por %p167, %p168
    %p170 = scmp.ne.s32.totalorder %s158, %s159
    %p171 = scmp.eq.s32.totalorder %s23, 1
    %p172 = por %p170, %p171
    %p174 = scmp.ne.s32.totalorder %s159, %s173
    %p175 = scmp.eq.s32.totalorder %s23, 0
    %p176 = por %p174, %p175
    %s178 = sadd.s32 %s177, 1
    %p181 = scmp.eq.s32.totalorder %s17, 1
    %p182 = scmp.ne.s32.totalorder %s177, %s179
    %p183 = scmp.eq.s32.totalorder %s17, 0
    %p184 = por %p182, %p183
    %p185 = scmp.ne.s32.totalorder %s177, %s179
    %p186 = scmp.eq.s32.totalorder %s22, 1
    %p187 = por %p185, %p186
    %p188 = scmp.ne.s32.totalorder %s179, %s180
    %p189 = scmp.eq.s32.totalorder %s22, 0
    %p190 = por %p188, %p189
    %p191 = scmp.ne.s32.totalorder %s179, %s180
    %p192 = scmp.eq.s32.totalorder %s23, 1
    %p193 = por %p191, %p192
    %p195 = scmp.ne.s32.totalorder %s180, %s194
    %p196 = scmp.eq.s32.totalorder %s23, 0
    %p197 = por %p195, %p196
    %s199 = sadd.s32 %s198, 1
    %p202 = scmp.eq.s32.totalorder %s17, 1
    %p203 = scmp.ne.s32.totalorder %s198, %s200
    %p204 = scmp.eq.s32.totalorder %s17, 0
    %p205 = por %p203, %p204
    %p206 = scmp.ne.s32.totalorder %s198, %s200
    %p207 = scmp.eq.s32.totalorder %s22, 1
    %p208 = por %p206, %p207
    %p209 = scmp.ne.s32.totalorder %s200, %s201
    %p210 = scmp.eq.s32.totalorder %s22, 0
    %p211 = por %p209, %p210
    %p212 = scmp.ne.s32.totalorder %s200, %s201
    %p213 = scmp.eq.s32.totalorder %s23, 1
    %p214 = por %p212, %p213
    %p216 = scmp.ne.s32.totalorder %s201, %s215
    %p217 = scmp.eq.s32.totalorder %s23, 0
    %p218 = por %p216, %p217
    %s220 = sadd.s32 %s219, 1
    %p223 = scmp.eq.s32.totalorder %s17, 1
    %p224 = scmp.ne.s32.totalorder %s219, %s221
    %p225 = scmp.eq.s32.totalorder %s17, 0
    %p226 = por %p224, %p225
    %p227 = scmp.ne.s32.totalorder %s219, %s221
    %p228 = scmp.eq.s32.totalorder %s22, 1
    %p229 = por %p227, %p228
    %p230 = scmp.ne.s32.totalorder %s221, %s222
    %p231 = scmp.eq.s32.totalorder %s22, 0
    %p232 = por %p230, %p231
    %p233 = scmp.ne.s32.totalorder %s221, %s222
    %p234 = scmp.eq.s32.totalorder %s23, 1
    %p235 = por %p233, %p234
    %p237 = scmp.ne.s32.totalorder %s222, %s236
    %p238 = scmp.eq.s32.totalorder %s23, 0
    %p239 = por %p237, %p238
    %s241 = sadd.s32 %s240, 1
    %p244 = scmp.eq.s32.totalorder %s17, 1
    %p245 = scmp.ne.s32.totalorder %s240, %s242
    %p246 = scmp.eq.s32.totalorder %s17, 0
    %p247 = por %p245, %p246
    %p248 = scmp.ne.s32.totalorder %s240, %s242
    %p249 = scmp.eq.s32.totalorder %s22, 1
    %p250 = por %p248, %p249
    %p251 = scmp.ne.s32.totalorder %s242, %s243
    %p252 = scmp.eq.s32.totalorder %s22, 0
    %p253 = por %p251, %p252
    %p254 = scmp.ne.s32.totalorder %s242, %s243
    %p255 = scmp.eq.s32.totalorder %s23, 1
    %p256 = por %p254, %p255
    %p258 = scmp.ne.s32.totalorder %s243, %s257
    %p259 = scmp.eq.s32.totalorder %s23, 0
    %p260 = por %p258, %p259
    %s261 = ssub.s32 %s17, %s24
    %p262 = scmp.eq.s32.totalorder %s261, 0
    %s264 = sadd.s32 %s263, 1
    %s265 = scalar_select %p262, %s263, %s264
    %p268 = pneg %p262
    %p269 = scmp.eq.s32.totalorder %s17, 1
    %p270 = por %p268, %p269
    %p271 = scmp.ne.s32.totalorder %s263, %s266
    %p272 = scmp.eq.s32.totalorder %s17, 0
    %p273 = por %p271, %p272
    %p274 = scmp.ne.s32.totalorder %s263, %s266
    %p275 = scmp.eq.s32.totalorder %s22, 1
    %p276 = por %p274, %p275
    %p277 = scmp.ne.s32.totalorder %s266, %s267
    %p278 = scmp.eq.s32.totalorder %s22, 0
    %p279 = por %p277, %p278
    %p280 = scmp.ne.s32.totalorder %s266, %s267
    %p281 = scmp.eq.s32.totalorder %s23, 1
    %p282 = por %p280, %p281
    %p284 = scmp.ne.s32.totalorder %s267, %s283
    %p285 = scmp.eq.s32.totalorder %s23, 0
    %p286 = por %p284, %p285
    %p287 = scmp.le.s32.totalorder 1, %s17
    %p288 = scmp.lt.s32.totalorder %s17, 3
    %p289 = pnand %p287, %p288
    %p290 = pneg %p289
    // Predicated region
    $region9: #{flow_step_forward.1} parent=5 // pred_check
      _
    $region10: #{flow_step_forward.1} parent=5 // pred_check_branch
      %292 = sbr.rel (%p289) target = $region12
    $region11: #{flow_step_forward.1} parent=5 // pred_region
      %s293 = ssub.s32 %s17, 1
      // Predicated region
      $region13: #{flow_step_forward.1} parent=11 // pred_check
        %p294 = pneg %p64
      $region14: #{flow_step_forward.1} parent=11 // pred_check_branch
        %296 = sbr.rel (%p294) target = $region16
      $region15: #{flow_step_forward.1} parent=11 // pred_region
        _
      $region16: #{flow_step_forward.1} parent=11 // pred_fallthru
        _
      // Predicated region
      $region17: #{flow_step_forward.1} parent=11 // pred_check
        %p297 = pneg %p85
      $region18: #{flow_step_forward.1} parent=11 // pred_check_branch
        %299 = sbr.rel (%p297) target = $region20
      $region19: #{flow_step_forward.1} parent=11 // pred_region
        _
      $region20: #{flow_step_forward.1} parent=11 // pred_fallthru
        _
      // Predicated region
      $region21: #{flow_step_forward.1} parent=11 // pred_check
        %p300 = pneg %p106
      $region22: #{flow_step_forward.1} parent=11 // pred_check_branch
        %302 = sbr.rel (%p300) target = $region24
      $region23: #{flow_step_forward.1} parent=11 // pred_region
        _
      $region24: #{flow_step_forward.1} parent=11 // pred_fallthru
        _
      // Predicated region
      $region25: #{flow_step_forward.1} parent=11 // pred_check
        %p303 = pneg %p127
      $region26: #{flow_step_forward.1} parent=11 // pred_check_branch
        %305 = sbr.rel (%p303) target = $region28
      $region27: #{flow_step_forward.1} parent=11 // pred_region
        _
      $region28: #{flow_step_forward.1} parent=11 // pred_fallthru
        _
      // Predicated region
      $region29: #{flow_step_forward.1} parent=11 // pred_check
        %p306 = pneg %p148
      $region30: #{flow_step_forward.1} parent=11 // pred_check_branch
        %308 = sbr.rel (%p306) target = $region32
      $region31: #{flow_step_forward.1} parent=11 // pred_region
        _
      $region32: #{flow_step_forward.1} parent=11 // pred_fallthru
        _
      // Predicated region
      $region33: #{flow_step_forward.1} parent=11 // pred_check
        %p309 = pneg %p169
      $region34: #{flow_step_forward.1} parent=11 // pred_check_branch
        %311 = sbr.rel (%p309) target = $region36
      $region35: #{flow_step_forward.1} parent=11 // pred_region
        _
      $region36: #{flow_step_forward.1} parent=11 // pred_fallthru
        _
      // Predicated region
      $region37: #{flow_step_forward.1} parent=11 // pred_check
        %p312 = pneg %p190
      $region38: #{flow_step_forward.1} parent=11 // pred_check_branch
        %314 = sbr.rel (%p312) target = $region40
      $region39: #{flow_step_forward.1} parent=11 // pred_region
        _
      $region40: #{flow_step_forward.1} parent=11 // pred_fallthru
        _
      // Predicated region
      $region41: #{flow_step_forward.1} parent=11 // pred_check
        %p315 = pneg %p211
      $region42: #{flow_step_forward.1} parent=11 // pred_check_branch
        %317 = sbr.rel (%p315) target = $region44
      $region43: #{flow_step_forward.1} parent=11 // pred_region
        _
      $region44: #{flow_step_forward.1} parent=11 // pred_fallthru
        _
      // Predicated region
      $region45: #{flow_step_forward.1} parent=11 // pred_check
        %p318 = pneg %p232
      $region46: #{flow_step_forward.1} parent=11 // pred_check_branch
        %320 = sbr.rel (%p318) target = $region48
      $region47: #{flow_step_forward.1} parent=11 // pred_region
        _
      $region48: #{flow_step_forward.1} parent=11 // pred_fallthru
        _
      // Predicated region
      $region49: #{flow_step_forward.1} parent=11 // pred_check
        %p321 = pneg %p253
      $region50: #{flow_step_forward.1} parent=11 // pred_check_branch
        %323 = sbr.rel (%p321) target = $region52
      $region51: #{flow_step_forward.1} parent=11 // pred_region
        _
      $region52: #{flow_step_forward.1} parent=11 // pred_fallthru
        _
    $region12: #{flow_step_forward.1} parent=5 // pred_fallthru
      _
    %p324 = scmp.lt.s32.totalorder %s17, 2
    // Predicated region
    $region53: #{flow_step_forward.1} parent=5 // pred_check
      %p325 = pneg %p324
    $region54: #{flow_step_forward.1} parent=5 // pred_check_branch
      %327 = sbr.rel (%p325) target = $region56
    $region55: #{flow_step_forward.1} parent=5 // pred_region
      // Predicated region
      $region57: #{flow_step_forward.1} parent=55 // pred_check
        %p328 = pneg %p37
      $region58: #{flow_step_forward.1} parent=55 // pred_check_branch
        %330 = sbr.rel (%p328) target = $region60
      $region59: #{flow_step_forward.1} parent=55 // pred_region
        %p331 = scmp.lt.s32.totalorder %s17, 1
        %s332 = scalar_select %p331, %s17, 1
        %s333 = smul.addr %s332, 4
        %s334 = smul.addr %s333, 4
        %s335 = scalar_lea.vmem %s0, %s334
      $region60: #{flow_step_forward.1} parent=55 // pred_fallthru
        _
    $region56: #{flow_step_forward.1} parent=5 // pred_fallthru
      _
    %p336 = scmp.le.s32.totalorder 1, %s17
    %p337 = scmp.lt.s32.totalorder %s17, 3
    %p338 = pnand %p336, %p337
    %p339 = pneg %p338
    // Predicated region
    $region61: #{flow_step_forward.1} parent=5 // pred_check
      _
    $region62: #{flow_step_forward.1} parent=5 // pred_check_branch
      %341 = sbr.rel (%p338) target = $region64
    $region63: #{flow_step_forward.1} parent=5 // pred_region
      %s342 = ssub.s32 %s17, 1
      %p343 = scmp.lt.s32.totalorder %s22, 1
      %s344 = scalar_select %p343, %s22, 1
      %s345 = smul.addr %s344, 4
      %s346 = smul.addr %s345, 4
      %s347 = scalar_lea.vmem %s0, %s346
      %p348 = pneg %p43
      %p349 = pneg %p40
      %p350 = pneg %p64
      %p351 = pneg %p61
      %p352 = pneg %p85
      %p353 = pneg %p82
      %p354 = pneg %p106
      %p355 = pneg %p103
      %p356 = pneg %p127
      %p357 = pneg %p124
      %p358 = pneg %p148
      %p359 = pneg %p145
      %p360 = pneg %p169
      %p361 = pneg %p166
      %p362 = pneg %p190
      %p363 = pneg %p187
      %p364 = pneg %p211
      %p365 = pneg %p208
      %p366 = pneg %p232
      %p367 = pneg %p229
      %p368 = pneg %p253
      %p369 = pneg %p250
      %p370 = pneg %p279
      %p371 = pneg %p276
      %p372 = scmp.lt.s32.totalorder %s22, 1
      %s373 = scalar_select %p372, %s22, 1
      %s374 = smul.addr %s373, 3
      %s375 = smul.addr %s374, 4
      %s376 = scalar_lea.vmem %s11, %s375
      %p377 = scmp.lt.s32.totalorder %s22, 1
      %s378 = scalar_select %p377, %s22, 1
      %s379 = smul.addr %s378, 4
      %s380 = smul.addr %s379, 4
      %s381 = scalar_lea.vmem %s0, %s380
      %p382 = scmp.lt.s32.totalorder %s22, 1
      %s383 = scalar_select %p382, %s22, 1
      %s384 = smul.addr %s383, 3
      %s385 = smul.addr %s384, 4
      %s386 = scalar_lea.vmem %s11, %s385
      %v387 = vld [vmem:[%s3] sm:$0xf]
      %v388 = vld [vmem:[%s381] sm:$0xff]
      %v389 = vld [vmem:[%s381 + $0x8] sm:$0xff]
      %v390 = vld [vmem:[%s4] sm:$0xf]
      %v391 = vld [vmem:[%s1] sm:$0xf]
      %393 = vset.pattern.permute.xlu0 0
      %394 = vperm.xlu0 %393, %v390
      %v395 = vpop.permute.xlu0 %394
      %v398 = vlaneseq
      %v399 = vshrl.u32 %v398, 7
      %v400 = vsub.s32 0, %v399
      %v401 = vrot.slane %v391, %v400
      %v402 = vlaneseq
      %v403 = vshrl.u32 %v402, 7
      %v404 = vsub.s32 1, %v403
      %v405 = vrot.slane %v391, %v404
      %v406 = vlaneseq
      %v407 = vshrl.u32 %v406, 7
      %v408 = vsub.s32 2, %v407
      %v409 = vrot.slane %v391, %v408
      %v410 = vlaneseq
      %v411 = vshrl.u32 %v410, 7
      %v412 = vsub.s32 3, %v411
      %v413 = vrot.slane %v391, %v412
      %v418 = vmul.f32 %v395, %v401
      %v419 = vmul.f32 %v395, %v405
      %v420 = vmul.f32 %v395, %v409
      %v421 = vmul.f32 %v395, %v413
      %v424 = vcombine.high %v388, %v388
      %v425 = vcombine.high %v389, %v389
      %vm426 = vcmask 31744
      %v428 = vsel %vm426, %v387, 0
      %vm430 = vcmask 1043456
      %v431 = vsel %vm430, %v388, 0
      %v433 = vsel %vm430, %v424, 0
      %v435 = vsel %vm430, %v389, 0
      %v437 = vsel %vm430, %v425, 0
      %439 = vmatprep.subr.mxu0 %v433
      %440 = vmatpush1.msra.mxu0 %v431
      %441 = vmatprep.subr.mxu0 0.0
      %442 = vmatpush1.msra.mxu0 0.0
      %443 = vmatprep.subr.mxu0 0.0
      %444 = vmatpush1.msra.mxu0 0.0
      %445 = vmatprep.subr.mxu0 0.0
      %446 = vmatpush1.msra.mxu0 0.0
      %447 = vmatprep.subr.mxu0 0.0
      %448 = vmatpush1.msra.mxu0 0.0
      %449 = vmatprep.subr.mxu0 0.0
      %450 = vmatpush1.msra.mxu0 0.0
      %451 = vmatprep.subr.mxu0 0.0
      %452 = vmatpush1.msra.mxu0 0.0
      %453 = vmatprep.subr.mxu0 0.0
      %454 = vmatpush1.msra.mxu0 0.0
      %455 = vmatprep.subr.mxu0 0.0
      %456 = vmatpush1.msra.mxu0 0.0
      %457 = vmatprep.subr.mxu0 0.0
      %458 = vmatpush1.msra.mxu0 0.0
      %459 = vmatprep.subr.mxu0 0.0
      %460 = vmatpush1.msra.mxu0 0.0
      %461 = vmatprep.subr.mxu0 0.0
      %462 = vmatpush1.msra.mxu0 0.0
      %463 = vmatprep.subr.mxu0 0.0
      %464 = vmatpush1.msra.mxu0 0.0
      %465 = vmatprep.subr.mxu0 0.0
      %466 = vmatpush1.msra.mxu0 0.0
      %467 = vmatprep.subr.mxu0 0.0
      %468 = vmatpush1.msra.mxu0 0.0
      %469 = vmatprep.subr.mxu0 0.0
      %470 = vmatpush1.msra.mxu0 0.0
      %471 = vmatprep.subr.mxu0 0.0
      %472 = vmatpush1.msra.mxu0 0.0
      %473 = vmatprep.subr.mxu0 0.0
      %474 = vmatpush1.msra.mxu0 0.0
      %475 = vmatprep.subr.mxu0 0.0
      %476 = vmatpush1.msra.mxu0 0.0
      %477 = vmatprep.subr.mxu0 0.0
      %478 = vmatpush1.msra.mxu0 0.0
      %479 = vmatprep.subr.mxu0 0.0
      %480 = vmatpush1.msra.mxu0 0.0
      %481 = vmatprep.subr.mxu0 0.0
      %482 = vmatpush1.msra.mxu0 0.0
      %483 = vmatprep.subr.mxu0 0.0
      %484 = vmatpush1.msra.mxu0 0.0
      %485 = vmatprep.subr.mxu0 0.0
      %486 = vmatpush1.msra.mxu0 0.0
      %487 = vmatprep.subr.mxu0 0.0
      %488 = vmatpush1.msra.mxu0 0.0
      %489 = vmatprep.subr.mxu0 0.0
      %490 = vmatpush1.msra.mxu0 0.0
      %491 = vmatprep.subr.mxu0 0.0
      %492 = vmatpush1.msra.mxu0 0.0
      %493 = vmatprep.subr.mxu0 0.0
      %494 = vmatpush1.msra.mxu0 0.0
      %495 = vmatprep.subr.mxu0 0.0
      %496 = vmatpush1.msra.mxu0 0.0
      %497 = vmatprep.subr.mxu0 0.0
      %498 = vmatpush1.msra.mxu0 0.0
      %499 = vmatprep.subr.mxu0 0.0
      %500 = vmatpush1.msra.mxu0 0.0
      %501 = vmatprep.subr.mxu0 0.0
      %502 = vmatpush1.msra.mxu0 0.0
      %503 = vmatprep.mubr.f32.mxu0 0.0
      %504 = vmatmul.mubr.f32.gmra.mrb[0].mxu0 %v428
      %v505 = vpop.f32.mrb[0].mxu0
      %v506 = vadd.f32 %v418, %v505
      %v507 = vpop.f32.mrb[0].mxu0
      %v508 = vadd.f32 %v419, %v507
      %509 = vdwg.mxu0
      %510 = vmatprep.subr.mxu0 %v437
      %511 = vmatpush1.msra.mxu0 %v435
      %512 = vmatprep.subr.mxu0 0.0
      %513 = vmatpush1.msra.mxu0 0.0
      %514 = vmatprep.subr.mxu0 0.0
      %515 = vmatpush1.msra.mxu0 0.0
      %516 = vmatprep.subr.mxu0 0.0
      %517 = vmatpush1.msra.mxu0 0.0
      %518 = vmatprep.subr.mxu0 0.0
      %519 = vmatpush1.msra.mxu0 0.0
      %520 = vmatprep.subr.mxu0 0.0
      %521 = vmatpush1.msra.mxu0 0.0
      %522 = vmatprep.subr.mxu0 0.0
      %523 = vmatpush1.msra.mxu0 0.0
      %524 = vmatprep.subr.mxu0 0.0
      %525 = vmatpush1.msra.mxu0 0.0
      %526 = vmatprep.subr.mxu0 0.0
      %527 = vmatpush1.msra.mxu0 0.0
      %528 = vmatprep.subr.mxu0 0.0
      %529 = vmatpush1.msra.mxu0 0.0
      %530 = vmatprep.subr.mxu0 0.0
      %531 = vmatpush1.msra.mxu0 0.0
      %532 = vmatprep.subr.mxu0 0.0
      %533 = vmatpush1.msra.mxu0 0.0
      %534 = vmatprep.subr.mxu0 0.0
      %535 = vmatpush1.msra.mxu0 0.0
      %536 = vmatprep.subr.mxu0 0.0
      %537 = vmatpush1.msra.mxu0 0.0
      %538 = vmatprep.subr.mxu0 0.0
      %539 = vmatpush1.msra.mxu0 0.0
      %540 = vmatprep.subr.mxu0 0.0
      %541 = vmatpush1.msra.mxu0 0.0
      %542 = vmatprep.subr.mxu0 0.0
      %543 = vmatpush1.msra.mxu0 0.0
      %544 = vmatprep.subr.mxu0 0.0
      %545 = vmatpush1.msra.mxu0 0.0
      %546 = vmatprep.subr.mxu0 0.0
      %547 = vmatpush1.msra.mxu0 0.0
      %548 = vmatprep.subr.mxu0 0.0
      %549 = vmatpush1.msra.mxu0 0.0
      %550 = vmatprep.subr.mxu0 0.0
      %551 = vmatpush1.msra.mxu0 0.0
      %552 = vmatprep.subr.mxu0 0.0
      %553 = vmatpush1.msra.mxu0 0.0
      %554 = vmatprep.subr.mxu0 0.0
      %555 = vmatpush1.msra.mxu0 0.0
      %556 = vmatprep.subr.mxu0 0.0
      %557 = vmatpush1.msra.mxu0 0.0
      %558 = vmatprep.subr.mxu0 0.0
      %559 = vmatpush1.msra.mxu0 0.0
      %560 = vmatprep.subr.mxu0 0.0
      %561 = vmatpush1.msra.mxu0 0.0
      %562 = vmatprep.subr.mxu0 0.0
      %563 = vmatpush1.msra.mxu0 0.0
      %564 = vmatprep.subr.mxu0 0.0
      %565 = vmatpush1.msra.mxu0 0.0
      %566 = vmatprep.subr.mxu0 0.0
      %567 = vmatpush1.msra.mxu0 0.0
      %568 = vmatprep.subr.mxu0 0.0
      %569 = vmatpush1.msra.mxu0 0.0
      %570 = vmatprep.subr.mxu0 0.0
      %571 = vmatpush1.msra.mxu0 0.0
      %572 = vmatprep.subr.mxu0 0.0
      %573 = vmatpush1.msra.mxu0 0.0
      %574 = vmatprep.mubr.f32.mxu0 0.0
      %575 = vmatmul.mubr.f32.gmra.mrb[0].mxu0 %v428
      %v576 = vpop.f32.mrb[0].mxu0
      %v577 = vadd.f32 %v420, %v576
      %v578 = vpop.f32.mrb[0].mxu0
      %v579 = vadd.f32 %v421, %v578
      %580 = vdwg.mxu0
      %581 = vst [vmem:[#allocation2] sm:$0xff] 0.0
      %582 = vst [vmem:[#allocation2 + $0x8] sm:$0xff] 0.0
      %vm583 = vcmask 867328
      %584 = vst.msk [vmem:[#allocation2 + $0x10] sm:$0xff] %vm583, 0.0
      %585 = vst [vmem:[#allocation2 + $0x18] sm:$0xff] 0.0
      %586 = vst [vmem:[#allocation2 + $0x20] sm:$0xff] 0.0
      %587 = vst.msk [vmem:[#allocation2 + $0x28] sm:$0xff] %vm583, 0.0
      %588 = vst [vmem:[#allocation2 + $0x30] sm:$0xff] 0.0
      %589 = vst [vmem:[#allocation2 + $0x38] sm:$0xff] 0.0
      %590 = vst.msk [vmem:[#allocation2 + $0x40] sm:$0xff] %vm583, 0.0
      %591 = vst [vmem:[#allocation2 + $0x48] sm:$0xff] 0.0
      %592 = vst [vmem:[#allocation2 + $0x50] sm:$0xff] 0.0
      %593 = vst.msk [vmem:[#allocation2 + $0x58] sm:$0xff] %vm583, 0.0
      %594 = vst [vmem:[#allocation2 + $0x60] sm:$0xff] 0.0
      %595 = vst [vmem:[#allocation2 + $0x68] sm:$0xff] 0.0
      %596 = vst.msk [vmem:[#allocation2 + $0x70] sm:$0xff] %vm583, 0.0
      %597 = vst [vmem:[#allocation2 + $0x78] sm:$0xff] 0.0
      %598 = vst [vmem:[#allocation2 + $0x80] sm:$0xff] 0.0
      %599 = vst.msk [vmem:[#allocation2 + $0x88] sm:$0xff] %vm583, 0.0
      %600 = vst [vmem:[#allocation2 + $0x90] sm:$0xff] 0.0
      %601 = vst [vmem:[#allocation2 + $0x98] sm:$0xff] 0.0
      %602 = vst.msk [vmem:[#allocation2 + $0xa0] sm:$0xff] %vm583, 0.0
      %603 = vst [vmem:[#allocation2 + $0xa8] sm:$0xff] 0.0
      %604 = vst [vmem:[#allocation2 + $0xb0] sm:$0xff] 0.0
      %605 = vst.msk [vmem:[#allocation2 + $0xb8] sm:$0xff] %vm583, 0.0
      %606 = vst [vmem:[#allocation2 + $0xc0] sm:$0xff] 0.0
      %607 = vst [vmem:[#allocation2 + $0xc8] sm:$0xff] 0.0
      %608 = vst.msk [vmem:[#allocation2 + $0xd0] sm:$0xff] %vm583, 0.0
      %609 = vst [vmem:[#allocation2] sm:$0x3] %v506
      %610 = vst [vmem:[#allocation2 + $0x8] sm:$0x3] %v508
      %vm611 = vcmask 861184
      %612 = vst.msk [vmem:[#allocation2 + $0x10] sm:$0x3] %vm611, %v577
      %616 = vrot.lane.b32.xlu0 %v506, 127
      %v617 = vpop.permute.xlu0 %616
      %618 = vrot.lane.b32.xlu0 %v508, 127
      %v619 = vpop.permute.xlu0 %618
      %620 = vrot.lane.b32.xlu0 %v577, 127
      %v621 = vpop.permute.xlu0 %620
      %vm622 = vcmask 1039360
      %v623 = vsel %vm622, %v617, %v619
      %v624 = vsel %vm622, %v619, %v621
      %628 = vst [vmem:[#allocation2 + $0x18] sm:$0x3] %v623
      %629 = vst [vmem:[#allocation2 + $0x20] sm:$0x3] %v624
      %630 = vst.msk [vmem:[#allocation2 + $0x28] sm:$0x3] %vm611, %v621
      %631 = vrot.lane.b32.xlu0 %v506, 126
      %v632 = vpop.permute.xlu0 %631
      %633 = vrot.lane.b32.xlu0 %v508, 126
      %v634 = vpop.permute.xlu0 %633
      %635 = vrot.lane.b32.xlu0 %v577, 126
      %v636 = vpop.permute.xlu0 %635
      %vm637 = vcmask 1031168
      %v638 = vsel %vm637, %v632, %v634
      %v639 = vsel %vm637, %v634, %v636
      %643 = vst [vmem:[#allocation2 + $0x30] sm:$0x3] %v638
      %644 = vst [vmem:[#allocation2 + $0x38] sm:$0x3] %v639
      %645 = vst.msk [vmem:[#allocation2 + $0x40] sm:$0x3] %vm611, %v636
      %646 = vrot.lane.b32.xlu0 %v506, 108
      %v647 = vpop.permute.xlu0 %646
      %648 = vrot.lane.b32.xlu0 %v508, 108
      %v649 = vpop.permute.xlu0 %648
      %650 = vrot.lane.b32.xlu0 %v577, 108
      %v651 = vpop.permute.xlu0 %650
      %vm652 = vcmask 883712
      %v653 = vsel %vm652, %v647, %v649
      %v654 = vsel %vm652, %v649, %v651
      %658 = vst [vmem:[#allocation2 + $0x48] sm:$0x3] %v653
      %659 = vst [vmem:[#allocation2 + $0x50] sm:$0x3] %v654
      %660 = vst.msk [vmem:[#allocation2 + $0x58] sm:$0x3] %vm611, %v651
      %661 = vrot.lane.b32.xlu0 %v506, 107
      %v662 = vpop.permute.xlu0 %661
      %663 = vrot.lane.b32.xlu0 %v508, 107
      %v664 = vpop.permute.xlu0 %663
      %665 = vrot.lane.b32.xlu0 %v577, 107
      %v666 = vpop.permute.xlu0 %665
      %vm667 = vcmask 875520
      %v668 = vsel %vm667, %v662, %v664
      %v669 = vsel %vm667, %v664, %v666
      %673 = vst [vmem:[#allocation2 + $0x60] sm:$0x3] %v668
      %674 = vst [vmem:[#allocation2 + $0x68] sm:$0x3] %v669
      %675 = vst.msk [vmem:[#allocation2 + $0x70] sm:$0x3] %vm611, %v666
      %676 = vrot.lane.b32.xlu0 %v506, 106
      %v677 = vpop.permute.xlu0 %676
      %678 = vrot.lane.b32.xlu0 %v508, 106
      %v679 = vpop.permute.xlu0 %678
      %680 = vrot.lane.b32.xlu0 %v577, 106
      %v681 = vpop.permute.xlu0 %680
      %v682 = vsel %vm583, %v677, %v679
      %v683 = vsel %vm583, %v679, %v681
      %687 = vst [vmem:[#allocation2 + $0x78] sm:$0x3] %v682
      %688 = vst [vmem:[#allocation2 + $0x80] sm:$0x3] %v683
      %689 = vst.msk [vmem:[#allocation2 + $0x88] sm:$0x3] %vm611, %v681
      %691 = vrot.lane.b32.xlu0 %v506, 88
      %v692 = vpop.permute.xlu0 %691
      %693 = vrot.lane.b32.xlu0 %v508, 88
      %v694 = vpop.permute.xlu0 %693
      %695 = vrot.lane.b32.xlu0 %v577, 88
      %v696 = vpop.permute.xlu0 %695
      %697 = vrot.lane.b32.xlu0 %v579, 88
      %v698 = vpop.permute.xlu0 %697
      %vm699 = vcmask 719872
      %v700 = vsel %vm699, %v692, %v694
      %v701 = vsel %vm699, %v694, %v696
      %v702 = vsel %vm699, %v696, %v698
      %706 = vst [vmem:[#allocation2 + $0x90] sm:$0x3] %v700
      %707 = vst [vmem:[#allocation2 + $0x98] sm:$0x3] %v701
      %708 = vst.msk [vmem:[#allocation2 + $0xa0] sm:$0x3] %vm611, %v702
      %709 = vrot.lane.b32.xlu0 %v506, 87
      %v710 = vpop.permute.xlu0 %709
      %711 = vrot.lane.b32.xlu0 %v508, 87
      %v712 = vpop.permute.xlu0 %711
      %713 = vrot.lane.b32.xlu0 %v577, 87
      %v714 = vpop.permute.xlu0 %713
      %715 = vrot.lane.b32.xlu0 %v579, 87
      %v716 = vpop.permute.xlu0 %715
      %vm717 = vcmask 711680
      %v718 = vsel %vm717, %v710, %v712
      %v719 = vsel %vm717, %v712, %v714
      %v720 = vsel %vm717, %v714, %v716
      %724 = vst [vmem:[#allocation2 + $0xa8] sm:$0x3] %v718
      %725 = vst [vmem:[#allocation2 + $0xb0] sm:$0x3] %v719
      %726 = vst.msk [vmem:[#allocation2 + $0xb8] sm:$0x3] %vm611, %v720
      %727 = vrot.lane.b32.xlu0 %v506, 86
      %v728 = vpop.permute.xlu0 %727
      %729 = vrot.lane.b32.xlu0 %v508, 86
      %v730 = vpop.permute.xlu0 %729
      %731 = vrot.lane.b32.xlu0 %v577, 86
      %v732 = vpop.permute.xlu0 %731
      %733 = vrot.lane.b32.xlu0 %v579, 86
      %v734 = vpop.permute.xlu0 %733
      %vm735 = vcmask 703488
      %v736 = vsel %vm735, %v728, %v730
      %v737 = vsel %vm735, %v730, %v732
      %v738 = vsel %vm735, %v732, %v734
      %742 = vst [vmem:[#allocation2 + $0xc0] sm:$0x3] %v736
      %743 = vst [vmem:[#allocation2 + $0xc8] sm:$0x3] %v737
      %744 = vst.msk [vmem:[#allocation2 + $0xd0] sm:$0x3] %vm611, %v738
      %v745 = vld [vmem:[%s5] sm:$0xff]
      %v746 = vld [vmem:[%s5 + $0x8] sm:$0xff]
      %v747 = vld [vmem:[%s5 + $0x10] sm:$0xff]
      %v748 = vld [vmem:[%s5 + $0x18] sm:$0xff]
      %v749 = vld [vmem:[#allocation2] sm:$0xff]
      %v750 = vld [vmem:[#allocation2 + $0x8] sm:$0xff]
      %v751 = vld [vmem:[#allocation2 + $0x10] sm:$0xff]
      %v752 = vld [vmem:[#allocation2 + $0x18] sm:$0xff]
      %v753 = vld [vmem:[#allocation2 + $0x20] sm:$0xff]
      %v754 = vld [vmem:[#allocation2 + $0x28] sm:$0xff]
      %v755 = vld [vmem:[#allocation2 + $0x30] sm:$0xff]
      %v756 = vld [vmem:[#allocation2 + $0x38] sm:$0xff]
      %v757 = vld [vmem:[#allocation2 + $0x40] sm:$0xff]
      %v758 = vld [vmem:[#allocation2 + $0x48] sm:$0xff]
      %v759 = vld [vmem:[#allocation2 + $0x50] sm:$0xff]
      %v760 = vld [vmem:[#allocation2 + $0x58] sm:$0xff]
      %v761 = vld [vmem:[#allocation2 + $0x60] sm:$0xff]
      %v762 = vld [vmem:[#allocation2 + $0x68] sm:$0xff]
      %v763 = vld [vmem:[#allocation2 + $0x70] sm:$0xff]
      %v764 = vld [vmem:[#allocation2 + $0x78] sm:$0xff]
      %v765 = vld [vmem:[#allocation2 + $0x80] sm:$0xff]
      %v766 = vld [vmem:[#allocation2 + $0x88] sm:$0xff]
      %v767 = vld [vmem:[#allocation2 + $0x90] sm:$0xff]
      %v768 = vld [vmem:[#allocation2 + $0x98] sm:$0xff]
      %v769 = vld [vmem:[#allocation2 + $0xa0] sm:$0xff]
      %v770 = vld [vmem:[#allocation2 + $0xa8] sm:$0xff]
      %v771 = vld [vmem:[#allocation2 + $0xb0] sm:$0xff]
      %v772 = vld [vmem:[#allocation2 + $0xb8] sm:$0xff]
      %v773 = vld [vmem:[#allocation2 + $0xc0] sm:$0xff]
      %v774 = vld [vmem:[#allocation2 + $0xc8] sm:$0xff]
      %v775 = vld [vmem:[#allocation2 + $0xd0] sm:$0xff]
      %v776 = vld [vmem:[%s6] sm:$0xff]
      %v777 = vld [vmem:[%s6 + $0x8] sm:$0xff]
      %v778 = vld [vmem:[%s6 + $0x10] sm:$0xff]
      %v779 = vld [vmem:[%s6 + $0x18] sm:$0xff]
      %781 = vset.pattern.permute.xlu0 0
      %782 = vperm.xlu0 %781, %v776
      %v783 = vpop.permute.xlu0 %782
      %786 = vset.pattern.permute.xlu0 0
      %787 = vperm.xlu0 %786, %v777
      %v788 = vpop.permute.xlu0 %787
      %791 = vset.pattern.permute.xlu0 0
      %792 = vperm.xlu0 %791, %v778
      %v793 = vpop.permute.xlu0 %792
      %796 = vset.pattern.permute.xlu0 0
      %797 = vperm.xlu0 %796, %v779
      %v798 = vpop.permute.xlu0 %797
      %vm800 = vcmask 588800
      %v802 = vsel %vm800, %v745, 0
      %v805 = vsel %vm800, %v746, 0
      %v808 = vsel %vm800, %v747, 0
      %v811 = vsel %vm800, %v748, 0
      %813 = vmatprep.subr.mxu0 %v750
      %814 = vmatpush1.msra.mxu0 %v749
      %815 = vmatprep.subr.mxu0 %v753
      %816 = vmatpush1.msra.mxu0 %v752
      %817 = vmatprep.subr.mxu0 %v756
      %818 = vmatpush1.msra.mxu0 %v755
      %819 = vmatprep.subr.mxu0 %v759
      %820 = vmatpush1.msra.mxu0 %v758
      %821 = vmatprep.subr.mxu0 %v762
      %822 = vmatpush1.msra.mxu0 %v761
      %823 = vmatprep.subr.mxu0 %v765
      %824 = vmatpush1.msra.mxu0 %v764
      %825 = vmatprep.subr.mxu0 %v768
      %826 = vmatpush1.msra.mxu0 %v767
      %827 = vmatprep.subr.mxu0 %v771
      %828 = vmatpush1.msra.mxu0 %v770
      %829 = vmatprep.subr.mxu0 %v774
      %830 = vmatpush1.msra.mxu0 %v773
      %831 = vmatprep.subr.mxu0 0.0
      %832 = vmatpush1.msra.mxu0 0.0
      %833 = vmatprep.subr.mxu0 0.0
      %834 = vmatpush1.msra.mxu0 0.0
      %835 = vmatprep.subr.mxu0 0.0
      %836 = vmatpush1.msra.mxu0 0.0
      %837 = vmatprep.subr.mxu0 0.0
      %838 = vmatpush1.msra.mxu0 0.0
      %839 = vmatprep.subr.mxu0 0.0
      %840 = vmatpush1.msra.mxu0 0.0
      %841 = vmatprep.subr.mxu0 0.0
      %842 = vmatpush1.msra.mxu0 0.0
      %843 = vmatprep.subr.mxu0 0.0
      %844 = vmatpush1.msra.mxu0 0.0
      %845 = vmatprep.subr.mxu0 0.0
      %846 = vmatpush1.msra.mxu0 0.0
      %847 = vmatprep.subr.mxu0 0.0
      %848 = vmatpush1.msra.mxu0 0.0
      %849 = vmatprep.subr.mxu0 0.0
      %850 = vmatpush1.msra.mxu0 0.0
      %851 = vmatprep.subr.mxu0 0.0
      %852 = vmatpush1.msra.mxu0 0.0
      %853 = vmatprep.subr.mxu0 0.0
      %854 = vmatpush1.msra.mxu0 0.0
      %855 = vmatprep.subr.mxu0 0.0
      %856 = vmatpush1.msra.mxu0 0.0
      %857 = vmatprep.subr.mxu0 0.0
      %858 = vmatpush1.msra.mxu0 0.0
      %859 = vmatprep.subr.mxu0 0.0
      %860 = vmatpush1.msra.mxu0 0.0
      %861 = vmatprep.subr.mxu0 0.0
      %862 = vmatpush1.msra.mxu0 0.0
      %863 = vmatprep.subr.mxu0 0.0
      %864 = vmatpush1.msra.mxu0 0.0
      %865 = vmatprep.subr.mxu0 0.0
      %866 = vmatpush1.msra.mxu0 0.0
      %867 = vmatprep.subr.mxu0 0.0
      %868 = vmatpush1.msra.mxu0 0.0
      %869 = vmatprep.subr.mxu0 0.0
      %870 = vmatpush1.msra.mxu0 0.0
      %871 = vmatprep.subr.mxu0 0.0
      %872 = vmatpush1.msra.mxu0 0.0
      %873 = vmatprep.subr.mxu0 0.0
      %874 = vmatpush1.msra.mxu0 0.0
      %875 = vmatprep.subr.mxu0 0.0
      %876 = vmatpush1.msra.mxu0 0.0
      %877 = vmatprep.mubr.f32.mxu0 0.0
      %878 = vmatmul.mubr.f32.gmra.mrb[0].mxu0 %v802
      %v879 = vpop.f32.mrb[0].mxu0
      %v880 = vadd.f32 %v783, %v879
      %v881 = vpop.f32.mrb[0].mxu0
      %v882 = vadd.f32 %v783, %v881
      %883 = vmatprep.mubr.f32.mxu0 0.0
      %884 = vmatmul.mubr.f32.gmra.mrb[0].mxu0 %v805
      %v885 = vpop.f32.mrb[0].mxu0
      %v886 = vadd.f32 %v788, %v885
      %v887 = vpop.f32.mrb[0].mxu0
      %v888 = vadd.f32 %v788, %v887
      %889 = vmatprep.mubr.f32.mxu0 0.0
      %890 = vmatmul.mubr.f32.gmra.mrb[0].mxu0 %v808
      %v891 = vpop.f32.mrb[0].mxu0
      %v892 = vadd.f32 %v793, %v891
      %v893 = vpop.f32.mrb[0].mxu0
      %v894 = vadd.f32 %v793, %v893
      %895 = vmatprep.mubr.f32.mxu0 0.0
      %896 = vmatmul.mubr.f32.gmra.mrb[0].mxu0 %v811
      %v897 = vpop.f32.mrb[0].mxu0
      %v898 = vadd.f32 %v798, %v897
      %v899 = vpop.f32.mrb[0].mxu0
      %v900 = vadd.f32 %v798, %v899
      %901 = vdwg.mxu0
      %902 = vmatprep.subr.mxu0 0.0
      %903 = vmatpush1.msra.mxu0 %v751
      %904 = vmatprep.subr.mxu0 0.0
      %905 = vmatpush1.msra.mxu0 %v754
      %906 = vmatprep.subr.mxu0 0.0
      %907 = vmatpush1.msra.mxu0 %v757
      %908 = vmatprep.subr.mxu0 0.0
      %909 = vmatpush1.msra.mxu0 %v760
      %910 = vmatprep.subr.mxu0 0.0
      %911 = vmatpush1.msra.mxu0 %v763
      %912 = vmatprep.subr.mxu0 0.0
      %913 = vmatpush1.msra.mxu0 %v766
      %914 = vmatprep.subr.mxu0 0.0
      %915 = vmatpush1.msra.mxu0 %v769
      %916 = vmatprep.subr.mxu0 0.0
      %917 = vmatpush1.msra.mxu0 %v772
      %918 = vmatprep.subr.mxu0 0.0
      %919 = vmatpush1.msra.mxu0 %v775
      %920 = vmatprep.subr.mxu0 0.0
      %921 = vmatpush1.msra.mxu0 0.0
      %922 = vmatprep.subr.mxu0 0.0
      %923 = vmatpush1.msra.mxu0 0.0
      %924 = vmatprep.subr.mxu0 0.0
      %925 = vmatpush1.msra.mxu0 0.0
      %926 = vmatprep.subr.mxu0 0.0
      %927 = vmatpush1.msra.mxu0 0.0
      %928 = vmatprep.subr.mxu0 0.0
      %929 = vmatpush1.msra.mxu0 0.0
      %930 = vmatprep.subr.mxu0 0.0
      %931 = vmatpush1.msra.mxu0 0.0
      %932 = vmatprep.subr.mxu0 0.0
      %933 = vmatpush1.msra.mxu0 0.0
      %934 = vmatprep.subr.mxu0 0.0
      %935 = vmatpush1.msra.mxu0 0.0
      %936 = vmatprep.subr.mxu0 0.0
      %937 = vmatpush1.msra.mxu0 0.0
      %938 = vmatprep.subr.mxu0 0.0
      %939 = vmatpush1.msra.mxu0 0.0
      %940 = vmatprep.subr.mxu0 0.0
      %941 = vmatpush1.msra.mxu0 0.0
      %942 = vmatprep.subr.mxu0 0.0
      %943 = vmatpush1.msra.mxu0 0.0
      %944 = vmatprep.subr.mxu0 0.0
      %945 = vmatpush1.msra.mxu0 0.0
      %946 = vmatprep.subr.mxu0 0.0
      %947 = vmatpush1.msra.mxu0 0.0
      %948 = vmatprep.subr.mxu0 0.0
      %949 = vmatpush1.msra.mxu0 0.0
      %950 = vmatprep.subr.mxu0 0.0
      %951 = vmatpush1.msra.mxu0 0.0
      %952 = vmatprep.subr.mxu0 0.0
      %953 = vmatpush1.msra.mxu0 0.0
      %954 = vmatprep.subr.mxu0 0.0
      %955 = vmatpush1.msra.mxu0 0.0
      %956 = vmatprep.subr.mxu0 0.0
      %957 = vmatpush1.msra.mxu0 0.0
      %958 = vmatprep.subr.mxu0 0.0
      %959 = vmatpush1.msra.mxu0 0.0
      %960 = vmatprep.subr.mxu0 0.0
      %961 = vmatpush1.msra.mxu0 0.0
      %962 = vmatprep.subr.mxu0 0.0
      %963 = vmatpush1.msra.mxu0 0.0
      %964 = vmatprep.subr.mxu0 0.0
      %965 = vmatpush1.msra.mxu0 0.0
      %966 = vmatprep.mubr.f32.mxu0 0.0
      %967 = vmatmul.mubr.f32.gmra.mrb[0].mxu0 %v802
      %v968 = vpop.f32.mrb[0].mxu0
      %v969 = vadd.f32 %v783, %v968
      %v970 = vpop.f32.mrb[0].mxu0
      %971 = vmatprep.mubr.f32.mxu0 0.0
      %972 = vmatmul.mubr.f32.gmra.mrb[0].mxu0 %v805
      %v973 = vpop.f32.mrb[0].mxu0
      %v974 = vadd.f32 %v788, %v973
      %v975 = vpop.f32.mrb[0].mxu0
      %976 = vmatprep.mubr.f32.mxu0 0.0
      %977 = vmatmul.mubr.f32.gmra.mrb[0].mxu0 %v808
      %v978 = vpop.f32.mrb[0].mxu0
      %v979 = vadd.f32 %v793, %v978
      %v980 = vpop.f32.mrb[0].mxu0
      %981 = vmatprep.mubr.f32.mxu0 0.0
      %982 = vmatmul.mubr.f32.gmra.mrb[0].mxu0 %v811
      %v983 = vpop.f32.mrb[0].mxu0
      %v984 = vadd.f32 %v798, %v983
      %v985 = vpop.f32.mrb[0].mxu0
      %986 = vdwg.mxu0
      %v987 = vmax.f32 %v880, 0.0
      %v988 = vmax.f32 %v882, 0.0
      %v989 = vmax.f32 %v969, 0.0
      %v990 = vmax.f32 %v886, 0.0
      %v991 = vmax.f32 %v888, 0.0
      %v992 = vmax.f32 %v974, 0.0
      %v993 = vmax.f32 %v892, 0.0
      %v994 = vmax.f32 %v894, 0.0
      %v995 = vmax.f32 %v979, 0.0
      %v996 = vmax.f32 %v898, 0.0
      %v997 = vmax.f32 %v900, 0.0
      %v998 = vmax.f32 %v984, 0.0
      %v999 = vld [vmem:[%s7] sm:$0xff]
      %v1000 = vld [vmem:[%s7 + $0x8] sm:$0xff]
      %v1001 = vld [vmem:[%s7 + $0x10] sm:$0xff]
      %v1002 = vld [vmem:[%s7 + $0x18] sm:$0xff]
      %v1003 = vld [vmem:[%s8] sm:$0xff]
      %v1004 = vld [vmem:[%s8 + $0x8] sm:$0xff]
      %v1005 = vld [vmem:[%s8 + $0x10] sm:$0xff]
      %v1006 = vld [vmem:[%s8 + $0x18] sm:$0xff]
      %1008 = vset.pattern.permute.xlu0 0
      %1009 = vperm.xlu0 %1008, %v1003
      %v1010 = vpop.permute.xlu0 %1009
      %1013 = vset.pattern.permute.xlu0 0
      %1014 = vperm.xlu0 %1013, %v1004
      %v1015 = vpop.permute.xlu0 %1014
      %1018 = vset.pattern.permute.xlu0 0
      %1019 = vperm.xlu0 %1018, %v1005
      %v1020 = vpop.permute.xlu0 %1019
      %1023 = vset.pattern.permute.xlu0 0
      %1024 = vperm.xlu0 %1023, %v1006
      %v1025 = vpop.permute.xlu0 %1024
      %vm1027 = vcmask 261120
      %v1029 = vsel %vm1027, %v999, 0
      %v1032 = vsel %vm1027, %v1000, 0
      %v1035 = vsel %vm1027, %v1001, 0
      %v1038 = vsel %vm1027, %v1002, 0
      %1040 = vmatprep.subr.mxu0 %v988
      %1041 = vmatpush1.msra.mxu0 %v987
      %1042 = vmatprep.subr.mxu0 %v991
      %1043 = vmatpush1.msra.mxu0 %v990
      %1044 = vmatprep.subr.mxu0 %v994
      %1045 = vmatpush1.msra.mxu0 %v993
      %1046 = vmatprep.subr.mxu0 %v997
      %1047 = vmatpush1.msra.mxu0 %v996
      %1048 = vmatprep.subr.mxu0 0.0
      %1049 = vmatpush1.msra.mxu0 0.0
      %1050 = vmatprep.subr.mxu0 0.0
      %1051 = vmatpush1.msra.mxu0 0.0
      %1052 = vmatprep.subr.mxu0 0.0
      %1053 = vmatpush1.msra.mxu0 0.0
      %1054 = vmatprep.subr.mxu0 0.0
      %1055 = vmatpush1.msra.mxu0 0.0
      %1056 = vmatprep.subr.mxu0 0.0
      %1057 = vmatpush1.msra.mxu0 0.0
      %1058 = vmatprep.subr.mxu0 0.0
      %1059 = vmatpush1.msra.mxu0 0.0
      %1060 = vmatprep.subr.mxu0 0.0
      %1061 = vmatpush1.msra.mxu0 0.0
      %1062 = vmatprep.subr.mxu0 0.0
      %1063 = vmatpush1.msra.mxu0 0.0
      %1064 = vmatprep.subr.mxu0 0.0
      %1065 = vmatpush1.msra.mxu0 0.0
      %1066 = vmatprep.subr.mxu0 0.0
      %1067 = vmatpush1.msra.mxu0 0.0
      %1068 = vmatprep.subr.mxu0 0.0
      %1069 = vmatpush1.msra.mxu0 0.0
      %1070 = vmatprep.subr.mxu0 0.0
      %1071 = vmatpush1.msra.mxu0 0.0
      %1072 = vmatprep.subr.mxu0 0.0
      %1073 = vmatpush1.msra.mxu0 0.0
      %1074 = vmatprep.subr.mxu0 0.0
      %1075 = vmatpush1.msra.mxu0 0.0
      %1076 = vmatprep.subr.mxu0 0.0
      %1077 = vmatpush1.msra.mxu0 0.0
      %1078 = vmatprep.subr.mxu0 0.0
      %1079 = vmatpush1.msra.mxu0 0.0
      %1080 = vmatprep.subr.mxu0 0.0
      %1081 = vmatpush1.msra.mxu0 0.0
      %1082 = vmatprep.subr.mxu0 0.0
      %1083 = vmatpush1.msra.mxu0 0.0
      %1084 = vmatprep.subr.mxu0 0.0
      %1085 = vmatpush1.msra.mxu0 0.0
      %1086 = vmatprep.subr.mxu0 0.0
      %1087 = vmatpush1.msra.mxu0 0.0
      %1088 = vmatprep.subr.mxu0 0.0
      %1089 = vmatpush1.msra.mxu0 0.0
      %1090 = vmatprep.subr.mxu0 0.0
      %1091 = vmatpush1.msra.mxu0 0.0
      %1092 = vmatprep.subr.mxu0 0.0
      %1093 = vmatpush1.msra.mxu0 0.0
      %1094 = vmatprep.subr.mxu0 0.0
      %1095 = vmatpush1.msra.mxu0 0.0
      %1096 = vmatprep.subr.mxu0 0.0
      %1097 = vmatpush1.msra.mxu0 0.0
      %1098 = vmatprep.subr.mxu0 0.0
      %1099 = vmatpush1.msra.mxu0 0.0
      %1100 = vmatprep.subr.mxu0 0.0
      %1101 = vmatpush1.msra.mxu0 0.0
      %1102 = vmatprep.subr.mxu0 0.0
      %1103 = vmatpush1.msra.mxu0 0.0
      %1104 = vmatprep.mubr.f32.mxu0 0.0
      %1105 = vmatmul.mubr.f32.gmra.mrb[0].mxu0 %v1029
      %v1106 = vpop.f32.mrb[0].mxu0
      %v1107 = vadd.f32 %v1010, %v1106
      %v1108 = vpop.f32.mrb[0].mxu0
      %v1109 = vadd.f32 %v1010, %v1108
      %1110 = vmatprep.mubr.f32.mxu0 0.0
      %1111 = vmatmul.mubr.f32.gmra.mrb[0].mxu0 %v1032
      %v1112 = vpop.f32.mrb[0].mxu0
      %v1113 = vadd.f32 %v1015, %v1112
      %v1114 = vpop.f32.mrb[0].mxu0
      %v1115 = vadd.f32 %v1015, %v1114
      %1116 = vmatprep.mubr.f32.mxu0 0.0
      %1117 = vmatmul.mubr.f32.gmra.mrb[0].mxu0 %v1035
      %v1118 = vpop.f32.mrb[0].mxu0
      %v1119 = vadd.f32 %v1020, %v1118
      %v1120 = vpop.f32.mrb[0].mxu0
      %v1121 = vadd.f32 %v1020, %v1120
      %1122 = vmatprep.mubr.f32.mxu0 0.0
      %1123 = vmatmul.mubr.f32.gmra.mrb[0].mxu0 %v1038
      %v1124 = vpop.f32.mrb[0].mxu0
      %v1125 = vadd.f32 %v1025, %v1124
      %v1126 = vpop.f32.mrb[0].mxu0
      %v1127 = vadd.f32 %v1025, %v1126
      %1128 = vdwg.mxu0
      %1129 = vmatprep.subr.mxu0 0.0
      %1130 = vmatpush1.msra.mxu0 %v989
      %1131 = vmatprep.subr.mxu0 0.0
      %1132 = vmatpush1.msra.mxu0 %v992
      %1133 = vmatprep.subr.mxu0 0.0
      %1134 = vmatpush1.msra.mxu0 %v995
      %1135 = vmatprep.subr.mxu0 0.0
      %1136 = vmatpush1.msra.mxu0 %v998
      %1137 = vmatprep.subr.mxu0 0.0
      %1138 = vmatpush1.msra.mxu0 0.0
      %1139 = vmatprep.subr.mxu0 0.0
      %1140 = vmatpush1.msra.mxu0 0.0
      %1141 = vmatprep.subr.mxu0 0.0
      %1142 = vmatpush1.msra.mxu0 0.0
      %1143 = vmatprep.subr.mxu0 0.0
      %1144 = vmatpush1.msra.mxu0 0.0
      %1145 = vmatprep.subr.mxu0 0.0
      %1146 = vmatpush1.msra.mxu0 0.0
      %1147 = vmatprep.subr.mxu0 0.0
      %1148 = vmatpush1.msra.mxu0 0.0
      %1149 = vmatprep.subr.mxu0 0.0
      %1150 = vmatpush1.msra.mxu0 0.0
      %1151 = vmatprep.subr.mxu0 0.0
      %1152 = vmatpush1.msra.mxu0 0.0
      %1153 = vmatprep.subr.mxu0 0.0
      %1154 = vmatpush1.msra.mxu0 0.0
      %1155 = vmatprep.subr.mxu0 0.0
      %1156 = vmatpush1.msra.mxu0 0.0
      %1157 = vmatprep.subr.mxu0 0.0
      %1158 = vmatpush1.msra.mxu0 0.0
      %1159 = vmatprep.subr.mxu0 0.0
      %1160 = vmatpush1.msra.mxu0 0.0
      %1161 = vmatprep.subr.mxu0 0.0
      %1162 = vmatpush1.msra.mxu0 0.0
      %1163 = vmatprep.subr.mxu0 0.0
      %1164 = vmatpush1.msra.mxu0 0.0
      %1165 = vmatprep.subr.mxu0 0.0
      %1166 = vmatpush1.msra.mxu0 0.0
      %1167 = vmatprep.subr.mxu0 0.0
      %1168 = vmatpush1.msra.mxu0 0.0
      %1169 = vmatprep.subr.mxu0 0.0
      %1170 = vmatpush1.msra.mxu0 0.0
      %1171 = vmatprep.subr.mxu0 0.0
      %1172 = vmatpush1.msra.mxu0 0.0
      %1173 = vmatprep.subr.mxu0 0.0
      %1174 = vmatpush1.msra.mxu0 0.0
      %1175 = vmatprep.subr.mxu0 0.0
      %1176 = vmatpush1.msra.mxu0 0.0
      %1177 = vmatprep.subr.mxu0 0.0
      %1178 = vmatpush1.msra.mxu0 0.0
      %1179 = vmatprep.subr.mxu0 0.0
      %1180 = vmatpush1.msra.mxu0 0.0
      %1181 = vmatprep.subr.mxu0 0.0
      %1182 = vmatpush1.msra.mxu0 0.0
      %1183 = vmatprep.subr.mxu0 0.0
      %1184 = vmatpush1.msra.mxu0 0.0
      %1185 = vmatprep.subr.mxu0 0.0
      %1186 = vmatpush1.msra.mxu0 0.0
      %1187 = vmatprep.subr.mxu0 0.0
      %1188 = vmatpush1.msra.mxu0 0.0
      %1189 = vmatprep.subr.mxu0 0.0
      %1190 = vmatpush1.msra.mxu0 0.0
      %1191 = vmatprep.subr.mxu0 0.0
      %1192 = vmatpush1.msra.mxu0 0.0
      %1193 = vmatprep.mubr.f32.mxu0 0.0
      %1194 = vmatmul.mubr.f32.gmra.mrb[0].mxu0 %v1029
      %v1195 = vpop.f32.mrb[0].mxu0
      %v1196 = vadd.f32 %v1010, %v1195
      %v1197 = vpop.f32.mrb[0].mxu0
      %1198 = vmatprep.mubr.f32.mxu0 0.0
      %1199 = vmatmul.mubr.f32.gmra.mrb[0].mxu0 %v1032
      %v1200 = vpop.f32.mrb[0].mxu0
      %v1201 = vadd.f32 %v1015, %v1200
      %v1202 = vpop.f32.mrb[0].mxu0
      %1203 = vmatprep.mubr.f32.mxu0 0.0
      %1204 = vmatmul.mubr.f32.gmra.mrb[0].mxu0 %v1035
      %v1205 = vpop.f32.mrb[0].mxu0
      %v1206 = vadd.f32 %v1020, %v1205
      %v1207 = vpop.f32.mrb[0].mxu0
      %1208 = vmatprep.mubr.f32.mxu0 0.0
      %1209 = vmatmul.mubr.f32.gmra.mrb[0].mxu0 %v1038
      %v1210 = vpop.f32.mrb[0].mxu0
      %v1211 = vadd.f32 %v1025, %v1210
      %v1212 = vpop.f32.mrb[0].mxu0
      %1213 = vdwg.mxu0
      %v1214 = vmax.f32 %v1107, 0.0
      %v1215 = vmax.f32 %v1109, 0.0
      %v1216 = vmax.f32 %v1196, 0.0
      %v1217 = vmax.f32 %v1113, 0.0
      %v1218 = vmax.f32 %v1115, 0.0
      %v1219 = vmax.f32 %v1201, 0.0
      %v1220 = vmax.f32 %v1119, 0.0
      %v1221 = vmax.f32 %v1121, 0.0
      %v1222 = vmax.f32 %v1206, 0.0
      %v1223 = vmax.f32 %v1125, 0.0
      %v1224 = vmax.f32 %v1127, 0.0
      %v1225 = vmax.f32 %v1211, 0.0
      %v1226 = vld [vmem:[%s2] sm:$0x7]
      %v1228 = vlaneseq
      %v1229 = vshrl.u32 %v1228, 7
      %v1230 = vsub.s32 0, %v1229
      %v1231 = vrot.slane %v1226, %v1230
      %v1232 = vlaneseq
      %v1233 = vshrl.u32 %v1232, 7
      %v1234 = vsub.s32 1, %v1233
      %v1235 = vrot.slane %v1226, %v1234
      %v1236 = vlaneseq
      %v1237 = vshrl.u32 %v1236, 7
      %v1238 = vsub.s32 2, %v1237
      %v1239 = vrot.slane %v1226, %v1238
      %v1243 = vmul.f32 %v1214, %v1231
      %v1244 = vmul.f32 %v1215, %v1235
      %v1245 = vmul.f32 %v1216, %v1239
      %v1246 = vmul.f32 %v1217, %v1231
      %v1247 = vmul.f32 %v1218, %v1235
      %v1248 = vmul.f32 %v1219, %v1239
      %v1249 = vmul.f32 %v1220, %v1231
      %v1250 = vmul.f32 %v1221, %v1235
      %v1251 = vmul.f32 %v1222, %v1239
      %v1252 = vmul.f32 %v1223, %v1231
      %v1253 = vmul.f32 %v1224, %v1235
      %v1254 = vmul.f32 %v1225, %v1239
      %1255 = vst [vmem:[#allocation3] sm:$0xff] %v1243
      %1256 = vst [vmem:[#allocation3 + $0x8] sm:$0xff] %v1244
      %vm1257 = vcmask 523264
      %1258 = vst.msk [vmem:[#allocation3 + $0x10] sm:$0xff] %vm1257, %v1245
      %1259 = vst [vmem:[#allocation3 + $0x18] sm:$0xff] %v1246
      %1260 = vst [vmem:[#allocation3 + $0x20] sm:$0xff] %v1247
      %1261 = vst.msk [vmem:[#allocation3 + $0x28] sm:$0xff] %vm1257, %v1248
      %1262 = vst [vmem:[#allocation3 + $0x30] sm:$0xff] %v1249
      %1263 = vst [vmem:[#allocation3 + $0x38] sm:$0xff] %v1250
      %1264 = vst.msk [vmem:[#allocation3 + $0x40] sm:$0xff] %vm1257, %v1251
      %1265 = vst [vmem:[#allocation3 + $0x48] sm:$0xff] %v1252
      %1266 = vst [vmem:[#allocation3 + $0x50] sm:$0xff] %v1253
      %1267 = vst.msk [vmem:[#allocation3 + $0x58] sm:$0xff] %vm1257, %v1254
      %1280 = vrot.lane.b32.xlu0 %v1243, 127
      %v1281 = vpop.permute.xlu0 %1280
      %1282 = vrot.lane.b32.xlu0 %v1244, 127
      %v1283 = vpop.permute.xlu0 %1282
      %1284 = vrot.lane.b32.xlu0 %v1245, 127
      %v1285 = vpop.permute.xlu0 %1284
      %1286 = vrot.lane.b32.xlu0 %v1246, 127
      %v1287 = vpop.permute.xlu0 %1286
      %1288 = vrot.lane.b32.xlu0 %v1247, 127
      %v1289 = vpop.permute.xlu0 %1288
      %1290 = vrot.lane.b32.xlu0 %v1248, 127
      %v1291 = vpop.permute.xlu0 %1290
      %1292 = vrot.lane.b32.xlu0 %v1249, 127
      %v1293 = vpop.permute.xlu0 %1292
      %1294 = vrot.lane.b32.xlu0 %v1250, 127
      %v1295 = vpop.permute.xlu0 %1294
      %1296 = vrot.lane.b32.xlu0 %v1251, 127
      %v1297 = vpop.permute.xlu0 %1296
      %1298 = vrot.lane.b32.xlu0 %v1252, 127
      %v1299 = vpop.permute.xlu0 %1298
      %1300 = vrot.lane.b32.xlu0 %v1253, 127
      %v1301 = vpop.permute.xlu0 %1300
      %1302 = vrot.lane.b32.xlu0 %v1254, 127
      %v1303 = vpop.permute.xlu0 %1302
      %v1304 = vsel %vm622, %v1281, %v1283
      %v1305 = vsel %vm622, %v1283, %v1285
      %v1306 = vsel %vm622, %v1287, %v1289
      %v1307 = vsel %vm622, %v1289, %v1291
      %v1308 = vsel %vm622, %v1293, %v1295
      %v1309 = vsel %vm622, %v1295, %v1297
      %v1310 = vsel %vm622, %v1299, %v1301
      %v1311 = vsel %vm622, %v1301, %v1303
      %1324 = vst [vmem:[#allocation3 + $0x60] sm:$0xff] %v1304
      %1325 = vst [vmem:[#allocation3 + $0x68] sm:$0xff] %v1305
      %1326 = vst.msk [vmem:[#allocation3 + $0x70] sm:$0xff] %vm1257, %v1285
      %1327 = vst [vmem:[#allocation3 + $0x78] sm:$0xff] %v1306
      %1328 = vst [vmem:[#allocation3 + $0x80] sm:$0xff] %v1307
      %1329 = vst.msk [vmem:[#allocation3 + $0x88] sm:$0xff] %vm1257, %v1291
      %1330 = vst [vmem:[#allocation3 + $0x90] sm:$0xff] %v1308
      %1331 = vst [vmem:[#allocation3 + $0x98] sm:$0xff] %v1309
      %1332 = vst.msk [vmem:[#allocation3 + $0xa0] sm:$0xff] %vm1257, %v1297
      %1333 = vst [vmem:[#allocation3 + $0xa8] sm:$0xff] %v1310
      %1334 = vst [vmem:[#allocation3 + $0xb0] sm:$0xff] %v1311
      %1335 = vst.msk [vmem:[#allocation3 + $0xb8] sm:$0xff] %vm1257, %v1303
      %1336 = vrot.lane.b32.xlu0 %v1243, 126
      %v1337 = vpop.permute.xlu0 %1336
      %1338 = vrot.lane.b32.xlu0 %v1244, 126
      %v1339 = vpop.permute.xlu0 %1338
      %1340 = vrot.lane.b32.xlu0 %v1245, 126
      %v1341 = vpop.permute.xlu0 %1340
      %1342 = vrot.lane.b32.xlu0 %v1246, 126
      %v1343 = vpop.permute.xlu0 %1342
      %1344 = vrot.lane.b32.xlu0 %v1247, 126
      %v1345 = vpop.permute.xlu0 %1344
      %1346 = vrot.lane.b32.xlu0 %v1248, 126
      %v1347 = vpop.permute.xlu0 %1346
      %1348 = vrot.lane.b32.xlu0 %v1249, 126
      %v1349 = vpop.permute.xlu0 %1348
      %1350 = vrot.lane.b32.xlu0 %v1250, 126
      %v1351 = vpop.permute.xlu0 %1350
      %1352 = vrot.lane.b32.xlu0 %v1251, 126
      %v1353 = vpop.permute.xlu0 %1352
      %1354 = vrot.lane.b32.xlu0 %v1252, 126
      %v1355 = vpop.permute.xlu0 %1354
      %1356 = vrot.lane.b32.xlu0 %v1253, 126
      %v1357 = vpop.permute.xlu0 %1356
      %1358 = vrot.lane.b32.xlu0 %v1254, 126
      %v1359 = vpop.permute.xlu0 %1358
      %v1360 = vsel %vm637, %v1337, %v1339
      %v1361 = vsel %vm637, %v1339, %v1341
      %v1362 = vsel %vm637, %v1343, %v1345
      %v1363 = vsel %vm637, %v1345, %v1347
      %v1364 = vsel %vm637, %v1349, %v1351
      %v1365 = vsel %vm637, %v1351, %v1353
      %v1366 = vsel %vm637, %v1355, %v1357
      %v1367 = vsel %vm637, %v1357, %v1359
      %1380 = vst [vmem:[#allocation3 + $0xc0] sm:$0xff] %v1360
      %1381 = vst [vmem:[#allocation3 + $0xc8] sm:$0xff] %v1361
      %1382 = vst.msk [vmem:[#allocation3 + $0xd0] sm:$0xff] %vm1257, %v1341
      %1383 = vst [vmem:[#allocation3 + $0xd8] sm:$0xff] %v1362
      %1384 = vst [vmem:[#allocation3 + $0xe0] sm:$0xff] %v1363
      %1385 = vst.msk [vmem:[#allocation3 + $0xe8] sm:$0xff] %vm1257, %v1347
      %1386 = vst [vmem:[#allocation3 + $0xf0] sm:$0xff] %v1364
      %1387 = vst [vmem:[#allocation3 + $0xf8] sm:$0xff] %v1365
      %1388 = vst.msk [vmem:[#allocation3 + $0x100] sm:$0xff] %vm1257, %v1353
      %1389 = vst [vmem:[#allocation3 + $0x108] sm:$0xff] %v1366
      %1390 = vst [vmem:[#allocation3 + $0x110] sm:$0xff] %v1367
      %1391 = vst.msk [vmem:[#allocation3 + $0x118] sm:$0xff] %vm1257, %v1359
      %1392 = vrot.lane.b32.xlu0 %v1243, 108
      %v1393 = vpop.permute.xlu0 %1392
      %1394 = vrot.lane.b32.xlu0 %v1244, 108
      %v1395 = vpop.permute.xlu0 %1394
      %1396 = vrot.lane.b32.xlu0 %v1245, 108
      %v1397 = vpop.permute.xlu0 %1396
      %1398 = vrot.lane.b32.xlu0 %v1246, 108
      %v1399 = vpop.permute.xlu0 %1398
      %1400 = vrot.lane.b32.xlu0 %v1247, 108
      %v1401 = vpop.permute.xlu0 %1400
      %1402 = vrot.lane.b32.xlu0 %v1248, 108
      %v1403 = vpop.permute.xlu0 %1402
      %1404 = vrot.lane.b32.xlu0 %v1249, 108
      %v1405 = vpop.permute.xlu0 %1404
      %1406 = vrot.lane.b32.xlu0 %v1250, 108
      %v1407 = vpop.permute.xlu0 %1406
      %1408 = vrot.lane.b32.xlu0 %v1251, 108
      %v1409 = vpop.permute.xlu0 %1408
      %1410 = vrot.lane.b32.xlu0 %v1252, 108
      %v1411 = vpop.permute.xlu0 %1410
      %1412 = vrot.lane.b32.xlu0 %v1253, 108
      %v1413 = vpop.permute.xlu0 %1412
      %1414 = vrot.lane.b32.xlu0 %v1254, 108
      %v1415 = vpop.permute.xlu0 %1414
      %v1416 = vsel %vm652, %v1393, %v1395
      %v1417 = vsel %vm652, %v1395, %v1397
      %v1418 = vsel %vm652, %v1399, %v1401
      %v1419 = vsel %vm652, %v1401, %v1403
      %v1420 = vsel %vm652, %v1405, %v1407
      %v1421 = vsel %vm652, %v1407, %v1409
      %v1422 = vsel %vm652, %v1411, %v1413
      %v1423 = vsel %vm652, %v1413, %v1415
      %1436 = vst [vmem:[#allocation3 + $0x120] sm:$0xff] %v1416
      %1437 = vst [vmem:[#allocation3 + $0x128] sm:$0xff] %v1417
      %1438 = vst.msk [vmem:[#allocation3 + $0x130] sm:$0xff] %vm1257, %v1397
      %1439 = vst [vmem:[#allocation3 + $0x138] sm:$0xff] %v1418
      %1440 = vst [vmem:[#allocation3 + $0x140] sm:$0xff] %v1419
      %1441 = vst.msk [vmem:[#allocation3 + $0x148] sm:$0xff] %vm1257, %v1403
      %1442 = vst [vmem:[#allocation3 + $0x150] sm:$0xff] %v1420
      %1443 = vst [vmem:[#allocation3 + $0x158] sm:$0xff] %v1421
      %1444 = vst.msk [vmem:[#allocation3 + $0x160] sm:$0xff] %vm1257, %v1409
      %1445 = vst [vmem:[#allocation3 + $0x168] sm:$0xff] %v1422
      %1446 = vst [vmem:[#allocation3 + $0x170] sm:$0xff] %v1423
      %1447 = vst.msk [vmem:[#allocation3 + $0x178] sm:$0xff] %vm1257, %v1415
      %1448 = vrot.lane.b32.xlu0 %v1243, 107
      %v1449 = vpop.permute.xlu0 %1448
      %1450 = vrot.lane.b32.xlu0 %v1244, 107
      %v1451 = vpop.permute.xlu0 %1450
      %1452 = vrot.lane.b32.xlu0 %v1245, 107
      %v1453 = vpop.permute.xlu0 %1452
      %1454 = vrot.lane.b32.xlu0 %v1246, 107
      %v1455 = vpop.permute.xlu0 %1454
      %1456 = vrot.lane.b32.xlu0 %v1247, 107
      %v1457 = vpop.permute.xlu0 %1456
      %1458 = vrot.lane.b32.xlu0 %v1248, 107
      %v1459 = vpop.permute.xlu0 %1458
      %1460 = vrot.lane.b32.xlu0 %v1249, 107
      %v1461 = vpop.permute.xlu0 %1460
      %1462 = vrot.lane.b32.xlu0 %v1250, 107
      %v1463 = vpop.permute.xlu0 %1462
      %1464 = vrot.lane.b32.xlu0 %v1251, 107
      %v1465 = vpop.permute.xlu0 %1464
      %1466 = vrot.lane.b32.xlu0 %v1252, 107
      %v1467 = vpop.permute.xlu0 %1466
      %1468 = vrot.lane.b32.xlu0 %v1253, 107
      %v1469 = vpop.permute.xlu0 %1468
      %1470 = vrot.lane.b32.xlu0 %v1254, 107
      %v1471 = vpop.permute.xlu0 %1470
      %v1472 = vsel %vm667, %v1449, %v1451
      %v1473 = vsel %vm667, %v1451, %v1453
      %v1474 = vsel %vm667, %v1455, %v1457
      %v1475 = vsel %vm667, %v1457, %v1459
      %v1476 = vsel %vm667, %v1461, %v1463
      %v1477 = vsel %vm667, %v1463, %v1465
      %v1478 = vsel %vm667, %v1467, %v1469
      %v1479 = vsel %vm667, %v1469, %v1471
      %1492 = vst [vmem:[#allocation3 + $0x180] sm:$0xff] %v1472
      %1493 = vst [vmem:[#allocation3 + $0x188] sm:$0xff] %v1473
      %1494 = vst.msk [vmem:[#allocation3 + $0x190] sm:$0xff] %vm1257, %v1453
      %1495 = vst [vmem:[#allocation3 + $0x198] sm:$0xff] %v1474
      %1496 = vst [vmem:[#allocation3 + $0x1a0] sm:$0xff] %v1475
      %1497 = vst.msk [vmem:[#allocation3 + $0x1a8] sm:$0xff] %vm1257, %v1459
      %1498 = vst [vmem:[#allocation3 + $0x1b0] sm:$0xff] %v1476
      %1499 = vst [vmem:[#allocation3 + $0x1b8] sm:$0xff] %v1477
      %1500 = vst.msk [vmem:[#allocation3 + $0x1c0] sm:$0xff] %vm1257, %v1465
      %1501 = vst [vmem:[#allocation3 + $0x1c8] sm:$0xff] %v1478
      %1502 = vst [vmem:[#allocation3 + $0x1d0] sm:$0xff] %v1479
      %1503 = vst.msk [vmem:[#allocation3 + $0x1d8] sm:$0xff] %vm1257, %v1471
      %1504 = vrot.lane.b32.xlu0 %v1243, 106
      %v1505 = vpop.permute.xlu0 %1504
      %1506 = vrot.lane.b32.xlu0 %v1244, 106
      %v1507 = vpop.permute.xlu0 %1506
      %1508 = vrot.lane.b32.xlu0 %v1245, 106
      %v1509 = vpop.permute.xlu0 %1508
      %1510 = vrot.lane.b32.xlu0 %v1246, 106
      %v1511 = vpop.permute.xlu0 %1510
      %1512 = vrot.lane.b32.xlu0 %v1247, 106
      %v1513 = vpop.permute.xlu0 %1512
      %1514 = vrot.lane.b32.xlu0 %v1248, 106
      %v1515 = vpop.permute.xlu0 %1514
      %1516 = vrot.lane.b32.xlu0 %v1249, 106
      %v1517 = vpop.permute.xlu0 %1516
      %1518 = vrot.lane.b32.xlu0 %v1250, 106
      %v1519 = vpop.permute.xlu0 %1518
      %1520 = vrot.lane.b32.xlu0 %v1251, 106
      %v1521 = vpop.permute.xlu0 %1520
      %1522 = vrot.lane.b32.xlu0 %v1252, 106
      %v1523 = vpop.permute.xlu0 %1522
      %1524 = vrot.lane.b32.xlu0 %v1253, 106
      %v1525 = vpop.permute.xlu0 %1524
      %1526 = vrot.lane.b32.xlu0 %v1254, 106
      %v1527 = vpop.permute.xlu0 %1526
      %v1528 = vsel %vm583, %v1505, %v1507
      %v1529 = vsel %vm583, %v1507, %v1509
      %v1530 = vsel %vm583, %v1511, %v1513
      %v1531 = vsel %vm583, %v1513, %v1515
      %v1532 = vsel %vm583, %v1517, %v1519
      %v1533 = vsel %vm583, %v1519, %v1521
      %v1534 = vsel %vm583, %v1523, %v1525
      %v1535 = vsel %vm583, %v1525, %v1527
      %1548 = vst [vmem:[#allocation3 + $0x1e0] sm:$0xff] %v1528
      %1549 = vst [vmem:[#allocation3 + $0x1e8] sm:$0xff] %v1529
      %1550 = vst.msk [vmem:[#allocation3 + $0x1f0] sm:$0xff] %vm1257, %v1509
      %1551 = vst [vmem:[#allocation3 + $0x1f8] sm:$0xff] %v1530
      %1552 = vst [vmem:[#allocation3 + $0x200] sm:$0xff] %v1531
      %1553 = vst.msk [vmem:[#allocation3 + $0x208] sm:$0xff] %vm1257, %v1515
      %1554 = vst [vmem:[#allocation3 + $0x210] sm:$0xff] %v1532
      %1555 = vst [vmem:[#allocation3 + $0x218] sm:$0xff] %v1533
      %1556 = vst.msk [vmem:[#allocation3 + $0x220] sm:$0xff] %vm1257, %v1521
      %1557 = vst [vmem:[#allocation3 + $0x228] sm:$0xff] %v1534
      %1558 = vst [vmem:[#allocation3 + $0x230] sm:$0xff] %v1535
      %1559 = vst.msk [vmem:[#allocation3 + $0x238] sm:$0xff] %vm1257, %v1527
      %1560 = vrot.lane.b32.xlu0 %v1243, 88
      %v1561 = vpop.permute.xlu0 %1560
      %1562 = vrot.lane.b32.xlu0 %v1244, 88
      %v1563 = vpop.permute.xlu0 %1562
      %1564 = vrot.lane.b32.xlu0 %v1245, 88
      %v1565 = vpop.permute.xlu0 %1564
      %1566 = vrot.lane.b32.xlu0 %v1246, 88
      %v1567 = vpop.permute.xlu0 %1566
      %1568 = vrot.lane.b32.xlu0 %v1247, 88
      %v1569 = vpop.permute.xlu0 %1568
      %1570 = vrot.lane.b32.xlu0 %v1248, 88
      %v1571 = vpop.permute.xlu0 %1570
      %1572 = vrot.lane.b32.xlu0 %v1249, 88
      %v1573 = vpop.permute.xlu0 %1572
      %1574 = vrot.lane.b32.xlu0 %v1250, 88
      %v1575 = vpop.permute.xlu0 %1574
      %1576 = vrot.lane.b32.xlu0 %v1251, 88
      %v1577 = vpop.permute.xlu0 %1576
      %1578 = vrot.lane.b32.xlu0 %v1252, 88
      %v1579 = vpop.permute.xlu0 %1578
      %1580 = vrot.lane.b32.xlu0 %v1253, 88
      %v1581 = vpop.permute.xlu0 %1580
      %1582 = vrot.lane.b32.xlu0 %v1254, 88
      %v1583 = vpop.permute.xlu0 %1582
      %v1584 = vsel %vm699, %v1561, %v1563
      %v1585 = vsel %vm699, %v1563, %v1565
      %v1586 = vsel %vm699, %v1567, %v1569
      %v1587 = vsel %vm699, %v1569, %v1571
      %v1588 = vsel %vm699, %v1573, %v1575
      %v1589 = vsel %vm699, %v1575, %v1577
      %v1590 = vsel %vm699, %v1579, %v1581
      %v1591 = vsel %vm699, %v1581, %v1583
      %1604 = vst [vmem:[#allocation3 + $0x240] sm:$0xff] %v1584
      %1605 = vst [vmem:[#allocation3 + $0x248] sm:$0xff] %v1585
      %1606 = vst.msk [vmem:[#allocation3 + $0x250] sm:$0xff] %vm1257, %v1565
      %1607 = vst [vmem:[#allocation3 + $0x258] sm:$0xff] %v1586
      %1608 = vst [vmem:[#allocation3 + $0x260] sm:$0xff] %v1587
      %1609 = vst.msk [vmem:[#allocation3 + $0x268] sm:$0xff] %vm1257, %v1571
      %1610 = vst [vmem:[#allocation3 + $0x270] sm:$0xff] %v1588
      %1611 = vst [vmem:[#allocation3 + $0x278] sm:$0xff] %v1589
      %1612 = vst.msk [vmem:[#allocation3 + $0x280] sm:$0xff] %vm1257, %v1577
      %1613 = vst [vmem:[#allocation3 + $0x288] sm:$0xff] %v1590
      %1614 = vst [vmem:[#allocation3 + $0x290] sm:$0xff] %v1591
      %1615 = vst.msk [vmem:[#allocation3 + $0x298] sm:$0xff] %vm1257, %v1583
      %1616 = vrot.lane.b32.xlu0 %v1243, 87
      %v1617 = vpop.permute.xlu0 %1616
      %1618 = vrot.lane.b32.xlu0 %v1244, 87
      %v1619 = vpop.permute.xlu0 %1618
      %1620 = vrot.lane.b32.xlu0 %v1245, 87
      %v1621 = vpop.permute.xlu0 %1620
      %1622 = vrot.lane.b32.xlu0 %v1246, 87
      %v1623 = vpop.permute.xlu0 %1622
      %1624 = vrot.lane.b32.xlu0 %v1247, 87
      %v1625 = vpop.permute.xlu0 %1624
      %1626 = vrot.lane.b32.xlu0 %v1248, 87
      %v1627 = vpop.permute.xlu0 %1626
      %1628 = vrot.lane.b32.xlu0 %v1249, 87
      %v1629 = vpop.permute.xlu0 %1628
      %1630 = vrot.lane.b32.xlu0 %v1250, 87
      %v1631 = vpop.permute.xlu0 %1630
      %1632 = vrot.lane.b32.xlu0 %v1251, 87
      %v1633 = vpop.permute.xlu0 %1632
      %1634 = vrot.lane.b32.xlu0 %v1252, 87
      %v1635 = vpop.permute.xlu0 %1634
      %1636 = vrot.lane.b32.xlu0 %v1253, 87
      %v1637 = vpop.permute.xlu0 %1636
      %1638 = vrot.lane.b32.xlu0 %v1254, 87
      %v1639 = vpop.permute.xlu0 %1638
      %v1640 = vsel %vm717, %v1617, %v1619
      %v1641 = vsel %vm717, %v1619, %v1621
      %v1642 = vsel %vm717, %v1623, %v1625
      %v1643 = vsel %vm717, %v1625, %v1627
      %v1644 = vsel %vm717, %v1629, %v1631
      %v1645 = vsel %vm717, %v1631, %v1633
      %v1646 = vsel %vm717, %v1635, %v1637
      %v1647 = vsel %vm717, %v1637, %v1639
      %1660 = vst [vmem:[#allocation3 + $0x2a0] sm:$0xff] %v1640
      %1661 = vst [vmem:[#allocation3 + $0x2a8] sm:$0xff] %v1641
      %1662 = vst.msk [vmem:[#allocation3 + $0x2b0] sm:$0xff] %vm1257, %v1621
      %1663 = vst [vmem:[#allocation3 + $0x2b8] sm:$0xff] %v1642
      %1664 = vst [vmem:[#allocation3 + $0x2c0] sm:$0xff] %v1643
      %1665 = vst.msk [vmem:[#allocation3 + $0x2c8] sm:$0xff] %vm1257, %v1627
      %1666 = vst [vmem:[#allocation3 + $0x2d0] sm:$0xff] %v1644
      %1667 = vst [vmem:[#allocation3 + $0x2d8] sm:$0xff] %v1645
      %1668 = vst.msk [vmem:[#allocation3 + $0x2e0] sm:$0xff] %vm1257, %v1633
      %1669 = vst [vmem:[#allocation3 + $0x2e8] sm:$0xff] %v1646
      %1670 = vst [vmem:[#allocation3 + $0x2f0] sm:$0xff] %v1647
      %1671 = vst.msk [vmem:[#allocation3 + $0x2f8] sm:$0xff] %vm1257, %v1639
      %1672 = vrot.lane.b32.xlu0 %v1243, 86
      %v1673 = vpop.permute.xlu0 %1672
      %1674 = vrot.lane.b32.xlu0 %v1244, 86
      %v1675 = vpop.permute.xlu0 %1674
      %1676 = vrot.lane.b32.xlu0 %v1245, 86
      %v1677 = vpop.permute.xlu0 %1676
      %1678 = vrot.lane.b32.xlu0 %v1246, 86
      %v1679 = vpop.permute.xlu0 %1678
      %1680 = vrot.lane.b32.xlu0 %v1247, 86
      %v1681 = vpop.permute.xlu0 %1680
      %1682 = vrot.lane.b32.xlu0 %v1248, 86
      %v1683 = vpop.permute.xlu0 %1682
      %1684 = vrot.lane.b32.xlu0 %v1249, 86
      %v1685 = vpop.permute.xlu0 %1684
      %1686 = vrot.lane.b32.xlu0 %v1250, 86
      %v1687 = vpop.permute.xlu0 %1686
      %1688 = vrot.lane.b32.xlu0 %v1251, 86
      %v1689 = vpop.permute.xlu0 %1688
      %1690 = vrot.lane.b32.xlu0 %v1252, 86
      %v1691 = vpop.permute.xlu0 %1690
      %1692 = vrot.lane.b32.xlu0 %v1253, 86
      %v1693 = vpop.permute.xlu0 %1692
      %1694 = vrot.lane.b32.xlu0 %v1254, 86
      %v1695 = vpop.permute.xlu0 %1694
      %v1696 = vsel %vm735, %v1673, %v1675
      %v1697 = vsel %vm735, %v1675, %v1677
      %v1698 = vsel %vm735, %v1679, %v1681
      %v1699 = vsel %vm735, %v1681, %v1683
      %v1700 = vsel %vm735, %v1685, %v1687
      %v1701 = vsel %vm735, %v1687, %v1689
      %v1702 = vsel %vm735, %v1691, %v1693
      %v1703 = vsel %vm735, %v1693, %v1695
      %1716 = vst [vmem:[#allocation3 + $0x300] sm:$0xff] %v1696
      %1717 = vst [vmem:[#allocation3 + $0x308] sm:$0xff] %v1697
      %1718 = vst.msk [vmem:[#allocation3 + $0x310] sm:$0xff] %vm1257, %v1677
      %1719 = vst [vmem:[#allocation3 + $0x318] sm:$0xff] %v1698
      %1720 = vst [vmem:[#allocation3 + $0x320] sm:$0xff] %v1699
      %1721 = vst.msk [vmem:[#allocation3 + $0x328] sm:$0xff] %vm1257, %v1683
      %1722 = vst [vmem:[#allocation3 + $0x330] sm:$0xff] %v1700
      %1723 = vst [vmem:[#allocation3 + $0x338] sm:$0xff] %v1701
      %1724 = vst.msk [vmem:[#allocation3 + $0x340] sm:$0xff] %vm1257, %v1689
      %1725 = vst [vmem:[#allocation3 + $0x348] sm:$0xff] %v1702
      %1726 = vst [vmem:[#allocation3 + $0x350] sm:$0xff] %v1703
      %1727 = vst.msk [vmem:[#allocation3 + $0x358] sm:$0xff] %vm1257, %v1695
      %v1728 = vld [vmem:[%s9] sm:$0x3f]
      %v1729 = vld [vmem:[#allocation3] sm:$0xff]
      %v1730 = vld [vmem:[#allocation3 + $0x8] sm:$0xff]
      %v1731 = vld [vmem:[#allocation3 + $0x10] sm:$0xff]
      %v1732 = vld [vmem:[#allocation3 + $0x18] sm:$0xff]
      %v1733 = vld [vmem:[#allocation3 + $0x20] sm:$0xff]
      %v1734 = vld [vmem:[#allocation3 + $0x28] sm:$0xff]
      %v1735 = vld [vmem:[#allocation3 + $0x30] sm:$0xff]
      %v1736 = vld [vmem:[#allocation3 + $0x38] sm:$0xff]
      %v1737 = vld [vmem:[#allocation3 + $0x40] sm:$0xff]
      %v1738 = vld [vmem:[#allocation3 + $0x48] sm:$0xff]
      %v1739 = vld [vmem:[#allocation3 + $0x50] sm:$0xff]
      %v1740 = vld [vmem:[#allocation3 + $0x58] sm:$0xff]
      %v1741 = vld [vmem:[#allocation3 + $0x60] sm:$0xff]
      %v1742 = vld [vmem:[#allocation3 + $0x68] sm:$0xff]
      %v1743 = vld [vmem:[#allocation3 + $0x70] sm:$0xff]
      %v1744 = vld [vmem:[#allocation3 + $0x78] sm:$0xff]
      %v1745 = vld [vmem:[#allocation3 + $0x80] sm:$0xff]
      %v1746 = vld [vmem:[#allocation3 + $0x88] sm:$0xff]
      %v1747 = vld [vmem:[#allocation3 + $0x90] sm:$0xff]
      %v1748 = vld [vmem:[#allocation3 + $0x98] sm:$0xff]
      %v1749 = vld [vmem:[#allocation3 + $0xa0] sm:$0xff]
      %v1750 = vld [vmem:[#allocation3 + $0xa8] sm:$0xff]
      %v1751 = vld [vmem:[#allocation3 + $0xb0] sm:$0xff]
      %v1752 = vld [vmem:[#allocation3 + $0xb8] sm:$0xff]
      %v1753 = vld [vmem:[#allocation3 + $0xc0] sm:$0xff]
      %v1754 = vld [vmem:[#allocation3 + $0xc8] sm:$0xff]
      %v1755 = vld [vmem:[#allocation3 + $0xd0] sm:$0xff]
      %v1756 = vld [vmem:[#allocation3 + $0xd8] sm:$0xff]
      %v1757 = vld [vmem:[#allocation3 + $0xe0] sm:$0xff]
      %v1758 = vld [vmem:[#allocation3 + $0xe8] sm:$0xff]
      %v1759 = vld [vmem:[#allocation3 + $0xf0] sm:$0xff]
      %v1760 = vld [vmem:[#allocation3 + $0xf8] sm:$0xff]
      %v1761 = vld [vmem:[#allocation3 + $0x100] sm:$0xff]
      %v1762 = vld [vmem:[#allocation3 + $0x108] sm:$0xff]
      %v1763 = vld [vmem:[#allocation3 + $0x110] sm:$0xff]
      %v1764 = vld [vmem:[#allocation3 + $0x118] sm:$0xff]
      %v1765 = vld [vmem:[#allocation3 + $0x120] sm:$0xff]
      %v1766 = vld [vmem:[#allocation3 + $0x128] sm:$0xff]
      %v1767 = vld [vmem:[#allocation3 + $0x130] sm:$0xff]
      %v1768 = vld [vmem:[#allocation3 + $0x138] sm:$0xff]
      %v1769 = vld [vmem:[#allocation3 + $0x140] sm:$0xff]
      %v1770 = vld [vmem:[#allocation3 + $0x148] sm:$0xff]
      %v1771 = vld [vmem:[#allocation3 + $0x150] sm:$0xff]
      %v1772 = vld [vmem:[#allocation3 + $0x158] sm:$0xff]
      %v1773 = vld [vmem:[#allocation3 + $0x160] sm:$0xff]
      %v1774 = vld [vmem:[#allocation3 + $0x168] sm:$0xff]
      %v1775 = vld [vmem:[#allocation3 + $0x170] sm:$0xff]
      %v1776 = vld [vmem:[#allocation3 + $0x178] sm:$0xff]
      %v1777 = vld [vmem:[#allocation3 + $0x180] sm:$0xff]
      %v1778 = vld [vmem:[#allocation3 + $0x188] sm:$0xff]
      %v1779 = vld [vmem:[#allocation3 + $0x190] sm:$0xff]
      %v1780 = vld [vmem:[#allocation3 + $0x198] sm:$0xff]
      %v1781 = vld [vmem:[#allocation3 + $0x1a0] sm:$0xff]
      %v1782 = vld [vmem:[#allocation3 + $0x1a8] sm:$0xff]
      %v1783 = vld [vmem:[#allocation3 + $0x1b0] sm:$0xff]
      %v1784 = vld [vmem:[#allocation3 + $0x1b8] sm:$0xff]
      %v1785 = vld [vmem:[#allocation3 + $0x1c0] sm:$0xff]
      %v1786 = vld [vmem:[#allocation3 + $0x1c8] sm:$0xff]
      %v1787 = vld [vmem:[#allocation3 + $0x1d0] sm:$0xff]
      %v1788 = vld [vmem:[#allocation3 + $0x1d8] sm:$0xff]
      %v1789 = vld [vmem:[#allocation3 + $0x1e0] sm:$0xff]
      %v1790 = vld [vmem:[#allocation3 + $0x1e8] sm:$0xff]
      %v1791 = vld [vmem:[#allocation3 + $0x1f0] sm:$0xff]
      %v1792 = vld [vmem:[#allocation3 + $0x1f8] sm:$0xff]
      %v1793 = vld [vmem:[#allocation3 + $0x200] sm:$0xff]
      %v1794 = vld [vmem:[#allocation3 + $0x208] sm:$0xff]
      %v1795 = vld [vmem:[#allocation3 + $0x210] sm:$0xff]
      %v1796 = vld [vmem:[#allocation3 + $0x218] sm:$0xff]
      %v1797 = vld [vmem:[#allocation3 + $0x220] sm:$0xff]
      %v1798 = vld [vmem:[#allocation3 + $0x228] sm:$0xff]
      %v1799 = vld [vmem:[#allocation3 + $0x230] sm:$0xff]
      %v1800 = vld [vmem:[#allocation3 + $0x238] sm:$0xff]
      %v1801 = vld [vmem:[#allocation3 + $0x240] sm:$0xff]
      %v1802 = vld [vmem:[#allocation3 + $0x248] sm:$0xff]
      %v1803 = vld [vmem:[#allocation3 + $0x250] sm:$0xff]
      %v1804 = vld [vmem:[#allocation3 + $0x258] sm:$0xff]
      %v1805 = vld [vmem:[#allocation3 + $0x260] sm:$0xff]
      %v1806 = vld [vmem:[#allocation3 + $0x268] sm:$0xff]
      %v1807 = vld [vmem:[#allocation3 + $0x270] sm:$0xff]
      %v1808 = vld [vmem:[#allocation3 + $0x278] sm:$0xff]
      %v1809 = vld [vmem:[#allocation3 + $0x280] sm:$0xff]
      %v1810 = vld [vmem:[#allocation3 + $0x288] sm:$0xff]
      %v1811 = vld [vmem:[#allocation3 + $0x290] sm:$0xff]
      %v1812 = vld [vmem:[#allocation3 + $0x298] sm:$0xff]
      %v1813 = vld [vmem:[#allocation3 + $0x2a0] sm:$0xff]
      %v1814 = vld [vmem:[#allocation3 + $0x2a8] sm:$0xff]
      %v1815 = vld [vmem:[#allocation3 + $0x2b0] sm:$0xff]
      %v1816 = vld [vmem:[#allocation3 + $0x2b8] sm:$0xff]
      %v1817 = vld [vmem:[#allocation3 + $0x2c0] sm:$0xff]
      %v1818 = vld [vmem:[#allocation3 + $0x2c8] sm:$0xff]
      %v1819 = vld [vmem:[#allocation3 + $0x2d0] sm:$0xff]
      %v1820 = vld [vmem:[#allocation3 + $0x2d8] sm:$0xff]
      %v1821 = vld [vmem:[#allocation3 + $0x2e0] sm:$0xff]
      %v1822 = vld [vmem:[#allocation3 + $0x2e8] sm:$0xff]
      %v1823 = vld [vmem:[#allocation3 + $0x2f0] sm:$0xff]
      %v1824 = vld [vmem:[#allocation3 + $0x2f8] sm:$0xff]
      %v1825 = vld [vmem:[#allocation3 + $0x300] sm:$0xff]
      %v1826 = vld [vmem:[#allocation3 + $0x308] sm:$0xff]
      %v1827 = vld [vmem:[#allocation3 + $0x310] sm:$0xff]
      %v1828 = vld [vmem:[#allocation3 + $0x318] sm:$0xff]
      %v1829 = vld [vmem:[#allocation3 + $0x320] sm:$0xff]
      %v1830 = vld [vmem:[#allocation3 + $0x328] sm:$0xff]
      %v1831 = vld [vmem:[#allocation3 + $0x330] sm:$0xff]
      %v1832 = vld [vmem:[#allocation3 + $0x338] sm:$0xff]
      %v1833 = vld [vmem:[#allocation3 + $0x340] sm:$0xff]
      %v1834 = vld [vmem:[#allocation3 + $0x348] sm:$0xff]
      %v1835 = vld [vmem:[#allocation3 + $0x350] sm:$0xff]
      %v1836 = vld [vmem:[#allocation3 + $0x358] sm:$0xff]
      %v1837 = vld [vmem:[%s10] sm:$0x3]
      %1839 = vset.pattern.permute.xlu0 0
      %1840 = vperm.xlu0 %1839, %v1837
      %v1841 = vpop.permute.xlu0 %1840
      %v1844 = vcombine.high %v1728, %v1728
      %v1846 = vunpack.c.l.s4 1983009808
      %v1847 = vunpack.c.0.s8 %v1846
      %v1848 = vlaneseq
      %v1849 = vshrl.u32 %v1848, 7
      %v1850 = vsub.s32 %v1847, %v1849
      %v1851 = vrot.slane %v1728, %v1850
      %v1853 = vunpack.c.l.s4 1983009808
      %v1854 = vunpack.c.0.s8 %v1853
      %v1855 = vlaneseq
      %v1856 = vshrl.u32 %v1855, 7
      %v1857 = vsub.s32 %v1854, %v1856
      %v1858 = vrot.slane %v1844, %v1857
      %v1859 = vcombine.high %v1851, %v1851
      %v1862 = vsel %vm1027, %v1858, 0
      %1864 = vmatprep.subr.mxu0 %v1730
      %1865 = vmatpush1.msra.mxu0 %v1729
      %1866 = vmatprep.subr.mxu0 %v1733
      %1867 = vmatpush1.msra.mxu0 %v1732
      %1868 = vmatprep.subr.mxu0 %v1736
      %1869 = vmatpush1.msra.mxu0 %v1735
      %1870 = vmatprep.subr.mxu0 %v1739
      %1871 = vmatpush1.msra.mxu0 %v1738
      %1872 = vmatprep.subr.mxu0 %v1742
      %1873 = vmatpush1.msra.mxu0 %v1741
      %1874 = vmatprep.subr.mxu0 %v1745
      %1875 = vmatpush1.msra.mxu0 %v1744
      %1876 = vmatprep.subr.mxu0 %v1748
      %1877 = vmatpush1.msra.mxu0 %v1747
      %1878 = vmatprep.subr.mxu0 %v1751
      %1879 = vmatpush1.msra.mxu0 %v1750
      %1880 = vmatprep.subr.mxu0 %v1754
      %1881 = vmatpush1.msra.mxu0 %v1753
      %1882 = vmatprep.subr.mxu0 %v1757
      %1883 = vmatpush1.msra.mxu0 %v1756
      %1884 = vmatprep.subr.mxu0 %v1760
      %1885 = vmatpush1.msra.mxu0 %v1759
      %1886 = vmatprep.subr.mxu0 %v1763
      %1887 = vmatpush1.msra.mxu0 %v1762
      %1888 = vmatprep.subr.mxu0 %v1766
      %1889 = vmatpush1.msra.mxu0 %v1765
      %1890 = vmatprep.subr.mxu0 %v1769
      %1891 = vmatpush1.msra.mxu0 %v1768
      %1892 = vmatprep.subr.mxu0 %v1772
      %1893 = vmatpush1.msra.mxu0 %v1771
      %1894 = vmatprep.subr.mxu0 %v1775
      %1895 = vmatpush1.msra.mxu0 %v1774
      %1896 = vmatprep.subr.mxu0 %v1778
      %1897 = vmatpush1.msra.mxu0 %v1777
      %1898 = vmatprep.subr.mxu0 %v1781
      %1899 = vmatpush1.msra.mxu0 %v1780
      %1900 = vmatprep.subr.mxu0 %v1784
      %1901 = vmatpush1.msra.mxu0 %v1783
      %1902 = vmatprep.subr.mxu0 %v1787
      %1903 = vmatpush1.msra.mxu0 %v1786
      %1904 = vmatprep.subr.mxu0 %v1790
      %1905 = vmatpush1.msra.mxu0 %v1789
      %1906 = vmatprep.subr.mxu0 %v1793
      %1907 = vmatpush1.msra.mxu0 %v1792
      %1908 = vmatprep.subr.mxu0 %v1796
      %1909 = vmatpush1.msra.mxu0 %v1795
      %1910 = vmatprep.subr.mxu0 %v1799
      %1911 = vmatpush1.msra.mxu0 %v1798
      %1912 = vmatprep.subr.mxu0 %v1802
      %1913 = vmatpush1.msra.mxu0 %v1801
      %1914 = vmatprep.subr.mxu0 %v1805
      %1915 = vmatpush1.msra.mxu0 %v1804
      %1916 = vmatprep.subr.mxu0 %v1808
      %1917 = vmatpush1.msra.mxu0 %v1807
      %1918 = vmatprep.subr.mxu0 %v1811
      %1919 = vmatpush1.msra.mxu0 %v1810
      %1920 = vmatprep.subr.mxu0 %v1814
      %1921 = vmatpush1.msra.mxu0 %v1813
      %1922 = vmatprep.subr.mxu0 %v1817
      %1923 = vmatpush1.msra.mxu0 %v1816
      %1924 = vmatprep.subr.mxu0 %v1820
      %1925 = vmatpush1.msra.mxu0 %v1819
      %1926 = vmatprep.subr.mxu0 %v1823
      %1927 = vmatpush1.msra.mxu0 %v1822
      %1928 = vmatprep.mubr.f32.mxu0 %v1859
      %1929 = vmatmul.mubr.f32.gmra.mrb[0].mxu0 %v1851
      %v1930 = vpop.f32.mrb[0].mxu0
      %v1931 = vadd.f32 %v1841, %v1930
      %v1932 = vpop.f32.mrb[0].mxu0
      %v1933 = vadd.f32 %v1841, %v1932
      %1934 = vdwg.mxu0
      %1935 = vmatprep.subr.mxu0 %v1826
      %1936 = vmatpush1.msra.mxu0 %v1825
      %1937 = vmatprep.subr.mxu0 %v1829
      %1938 = vmatpush1.msra.mxu0 %v1828
      %1939 = vmatprep.subr.mxu0 %v1832
      %1940 = vmatpush1.msra.mxu0 %v1831
      %1941 = vmatprep.subr.mxu0 %v1835
      %1942 = vmatpush1.msra.mxu0 %v1834
      %1943 = vmatprep.subr.mxu0 0.0
      %1944 = vmatpush1.msra.mxu0 0.0
      %1945 = vmatprep.subr.mxu0 0.0
      %1946 = vmatpush1.msra.mxu0 0.0
      %1947 = vmatprep.subr.mxu0 0.0
      %1948 = vmatpush1.msra.mxu0 0.0
      %1949 = vmatprep.subr.mxu0 0.0
      %1950 = vmatpush1.msra.mxu0 0.0
      %1951 = vmatprep.subr.mxu0 0.0
      %1952 = vmatpush1.msra.mxu0 0.0
      %1953 = vmatprep.subr.mxu0 0.0
      %1954 = vmatpush1.msra.mxu0 0.0
      %1955 = vmatprep.subr.mxu0 0.0
      %1956 = vmatpush1.msra.mxu0 0.0
      %1957 = vmatprep.subr.mxu0 0.0
      %1958 = vmatpush1.msra.mxu0 0.0
      %1959 = vmatprep.subr.mxu0 0.0
      %1960 = vmatpush1.msra.mxu0 0.0
      %1961 = vmatprep.subr.mxu0 0.0
      %1962 = vmatpush1.msra.mxu0 0.0
      %1963 = vmatprep.subr.mxu0 0.0
      %1964 = vmatpush1.msra.mxu0 0.0
      %1965 = vmatprep.subr.mxu0 0.0
      %1966 = vmatpush1.msra.mxu0 0.0
      %1967 = vmatprep.subr.mxu0 0.0
      %1968 = vmatpush1.msra.mxu0 0.0
      %1969 = vmatprep.subr.mxu0 0.0
      %1970 = vmatpush1.msra.mxu0 0.0
      %1971 = vmatprep.subr.mxu0 0.0
      %1972 = vmatpush1.msra.mxu0 0.0
      %1973 = vmatprep.subr.mxu0 0.0
      %1974 = vmatpush1.msra.mxu0 0.0
      %1975 = vmatprep.subr.mxu0 0.0
      %1976 = vmatpush1.msra.mxu0 0.0
      %1977 = vmatprep.subr.mxu0 0.0
      %1978 = vmatpush1.msra.mxu0 0.0
      %1979 = vmatprep.subr.mxu0 0.0
      %1980 = vmatpush1.msra.mxu0 0.0
      %1981 = vmatprep.subr.mxu0 0.0
      %1982 = vmatpush1.msra.mxu0 0.0
      %1983 = vmatprep.subr.mxu0 0.0
      %1984 = vmatpush1.msra.mxu0 0.0
      %1985 = vmatprep.subr.mxu0 0.0
      %1986 = vmatpush1.msra.mxu0 0.0
      %1987 = vmatprep.subr.mxu0 0.0
      %1988 = vmatpush1.msra.mxu0 0.0
      %1989 = vmatprep.subr.mxu0 0.0
      %1990 = vmatpush1.msra.mxu0 0.0
      %1991 = vmatprep.subr.mxu0 0.0
      %1992 = vmatpush1.msra.mxu0 0.0
      %1993 = vmatprep.subr.mxu0 0.0
      %1994 = vmatpush1.msra.mxu0 0.0
      %1995 = vmatprep.subr.mxu0 0.0
      %1996 = vmatpush1.msra.mxu0 0.0
      %1997 = vmatprep.subr.mxu0 0.0
      %1998 = vmatpush1.msra.mxu0 0.0
      %1999 = vmatprep.mubr.f32.mxu0 0.0
      %2000 = vmatmul.mubr.f32.gmra.mrb[0].mxu0 %v1862
      %v2001 = vpop.f32.mrb[0].mxu0
      %v2002 = vadd.f32 %v1931, %v2001
      %v2003 = vpop.f32.mrb[0].mxu0
      %v2004 = vadd.f32 %v1933, %v2003
      %2005 = vdwg.mxu0
      %2006 = vmatprep.subr.mxu0 0.0
      %2007 = vmatpush1.msra.mxu0 %v1731
      %2008 = vmatprep.subr.mxu0 0.0
      %2009 = vmatpush1.msra.mxu0 %v1734
      %2010 = vmatprep.subr.mxu0 0.0
      %2011 = vmatpush1.msra.mxu0 %v1737
      %2012 = vmatprep.subr.mxu0 0.0
      %2013 = vmatpush1.msra.mxu0 %v1740
      %2014 = vmatprep.subr.mxu0 0.0
      %2015 = vmatpush1.msra.mxu0 %v1743
      %2016 = vmatprep.subr.mxu0 0.0
      %2017 = vmatpush1.msra.mxu0 %v1746
      %2018 = vmatprep.subr.mxu0 0.0
      %2019 = vmatpush1.msra.mxu0 %v1749
      %2020 = vmatprep.subr.mxu0 0.0
      %2021 = vmatpush1.msra.mxu0 %v1752
      %2022 = vmatprep.subr.mxu0 0.0
      %2023 = vmatpush1.msra.mxu0 %v1755
      %2024 = vmatprep.subr.mxu0 0.0
      %2025 = vmatpush1.msra.mxu0 %v1758
      %2026 = vmatprep.subr.mxu0 0.0
      %2027 = vmatpush1.msra.mxu0 %v1761
      %2028 = vmatprep.subr.mxu0 0.0
      %2029 = vmatpush1.msra.mxu0 %v1764
      %2030 = vmatprep.subr.mxu0 0.0
      %2031 = vmatpush1.msra.mxu0 %v1767
      %2032 = vmatprep.subr.mxu0 0.0
      %2033 = vmatpush1.msra.mxu0 %v1770
      %2034 = vmatprep.subr.mxu0 0.0
      %2035 = vmatpush1.msra.mxu0 %v1773
      %2036 = vmatprep.subr.mxu0 0.0
      %2037 = vmatpush1.msra.mxu0 %v1776
      %2038 = vmatprep.subr.mxu0 0.0
      %2039 = vmatpush1.msra.mxu0 %v1779
      %2040 = vmatprep.subr.mxu0 0.0
      %2041 = vmatpush1.msra.mxu0 %v1782
      %2042 = vmatprep.subr.mxu0 0.0
      %2043 = vmatpush1.msra.mxu0 %v1785
      %2044 = vmatprep.subr.mxu0 0.0
      %2045 = vmatpush1.msra.mxu0 %v1788
      %2046 = vmatprep.subr.mxu0 0.0
      %2047 = vmatpush1.msra.mxu0 %v1791
      %2048 = vmatprep.subr.mxu0 0.0
      %2049 = vmatpush1.msra.mxu0 %v1794
      %2050 = vmatprep.subr.mxu0 0.0
      %2051 = vmatpush1.msra.mxu0 %v1797
      %2052 = vmatprep.subr.mxu0 0.0
      %2053 = vmatpush1.msra.mxu0 %v1800
      %2054 = vmatprep.subr.mxu0 0.0
      %2055 = vmatpush1.msra.mxu0 %v1803
      %2056 = vmatprep.subr.mxu0 0.0
      %2057 = vmatpush1.msra.mxu0 %v1806
      %2058 = vmatprep.subr.mxu0 0.0
      %2059 = vmatpush1.msra.mxu0 %v1809
      %2060 = vmatprep.subr.mxu0 0.0
      %2061 = vmatpush1.msra.mxu0 %v1812
      %2062 = vmatprep.subr.mxu0 0.0
      %2063 = vmatpush1.msra.mxu0 %v1815
      %2064 = vmatprep.subr.mxu0 0.0
      %2065 = vmatpush1.msra.mxu0 %v1818
      %2066 = vmatprep.subr.mxu0 0.0
      %2067 = vmatpush1.msra.mxu0 %v1821
      %2068 = vmatprep.subr.mxu0 0.0
      %2069 = vmatpush1.msra.mxu0 %v1824
      %2070 = vmatprep.mubr.f32.mxu0 %v1859
      %2071 = vmatmul.mubr.f32.gmra.mrb[0].mxu0 %v1851
      %v2072 = vpop.f32.mrb[0].mxu0
      %v2073 = vadd.f32 %v1841, %v2072
      %v2074 = vpop.f32.mrb[0].mxu0
      %2075 = vdwg.mxu0
      %2076 = vmatprep.subr.mxu0 0.0
      %2077 = vmatpush1.msra.mxu0 %v1827
      %2078 = vmatprep.subr.mxu0 0.0
      %2079 = vmatpush1.msra.mxu0 %v1830
      %2080 = vmatprep.subr.mxu0 0.0
      %2081 = vmatpush1.msra.mxu0 %v1833
      %2082 = vmatprep.subr.mxu0 0.0
      %2083 = vmatpush1.msra.mxu0 %v1836
      %2084 = vmatprep.subr.mxu0 0.0
      %2085 = vmatpush1.msra.mxu0 0.0
      %2086 = vmatprep.subr.mxu0 0.0
      %2087 = vmatpush1.msra.mxu0 0.0
      %2088 = vmatprep.subr.mxu0 0.0
      %2089 = vmatpush1.msra.mxu0 0.0
      %2090 = vmatprep.subr.mxu0 0.0
      %2091 = vmatpush1.msra.mxu0 0.0
      %2092 = vmatprep.subr.mxu0 0.0
      %2093 = vmatpush1.msra.mxu0 0.0
      %2094 = vmatprep.subr.mxu0 0.0
      %2095 = vmatpush1.msra.mxu0 0.0
      %2096 = vmatprep.subr.mxu0 0.0
      %2097 = vmatpush1.msra.mxu0 0.0
      %2098 = vmatprep.subr.mxu0 0.0
      %2099 = vmatpush1.msra.mxu0 0.0
      %2100 = vmatprep.subr.mxu0 0.0
      %2101 = vmatpush1.msra.mxu0 0.0
      %2102 = vmatprep.subr.mxu0 0.0
      %2103 = vmatpush1.msra.mxu0 0.0
      %2104 = vmatprep.subr.mxu0 0.0
      %2105 = vmatpush1.msra.mxu0 0.0
      %2106 = vmatprep.subr.mxu0 0.0
      %2107 = vmatpush1.msra.mxu0 0.0
      %2108 = vmatprep.subr.mxu0 0.0
      %2109 = vmatpush1.msra.mxu0 0.0
      %2110 = vmatprep.subr.mxu0 0.0
      %2111 = vmatpush1.msra.mxu0 0.0
      %2112 = vmatprep.subr.mxu0 0.0
      %2113 = vmatpush1.msra.mxu0 0.0
      %2114 = vmatprep.subr.mxu0 0.0
      %2115 = vmatpush1.msra.mxu0 0.0
      %2116 = vmatprep.subr.mxu0 0.0
      %2117 = vmatpush1.msra.mxu0 0.0
      %2118 = vmatprep.subr.mxu0 0.0
      %2119 = vmatpush1.msra.mxu0 0.0
      %2120 = vmatprep.subr.mxu0 0.0
      %2121 = vmatpush1.msra.mxu0 0.0
      %2122 = vmatprep.subr.mxu0 0.0
      %2123 = vmatpush1.msra.mxu0 0.0
      %2124 = vmatprep.subr.mxu0 0.0
      %2125 = vmatpush1.msra.mxu0 0.0
      %2126 = vmatprep.subr.mxu0 0.0
      %2127 = vmatpush1.msra.mxu0 0.0
      %2128 = vmatprep.subr.mxu0 0.0
      %2129 = vmatpush1.msra.mxu0 0.0
      %2130 = vmatprep.subr.mxu0 0.0
      %2131 = vmatpush1.msra.mxu0 0.0
      %2132 = vmatprep.subr.mxu0 0.0
      %2133 = vmatpush1.msra.mxu0 0.0
      %2134 = vmatprep.subr.mxu0 0.0
      %2135 = vmatpush1.msra.mxu0 0.0
      %2136 = vmatprep.subr.mxu0 0.0
      %2137 = vmatpush1.msra.mxu0 0.0
      %2138 = vmatprep.subr.mxu0 0.0
      %2139 = vmatpush1.msra.mxu0 0.0
      %2140 = vmatprep.mubr.f32.mxu0 0.0
      %2141 = vmatmul.mubr.f32.gmra.mrb[0].mxu0 %v1862
      %v2142 = vpop.f32.mrb[0].mxu0
      %v2143 = vadd.f32 %v2073, %v2142
      %v2144 = vpop.f32.mrb[0].mxu0
      %2145 = vdwg.mxu0
      %v2146 = vcombine.low %v506, %v508
      %2147 = vrot.lane.b32.xlu0 %v2146, 86
      %v2148 = vpop.permute.xlu0 %2147
      %v2149 = vrot.slane %v2148, 4
      %v2150 = vrot.slane %v732, 4
      %v2151 = vsel %vm430, %v2149, %v2150
      %v2152 = vsel %vm735, %v2148, %v2151
      %2155 = vst [vmem:[%s386] sm:$0x33] %v2152
      %vm2156 = vcmask 517120
      %2157 = vst.msk [vmem:[%s386 + $0x8] sm:$0x3] %vm2156, %v732
      %v2161 = vrot.slane %v2002, 6
      %v2162 = vrot.slane %v2004, 6
      %v2163 = vrot.slane %v2143, 6
      %2164 = vrot.lane.b32.xlu0 %v2161, 42
      %v2165 = vpop.permute.xlu0 %2164
      %2166 = vrot.lane.b32.xlu0 %v2162, 42
      %v2167 = vpop.permute.xlu0 %2166
      %2168 = vrot.lane.b32.xlu0 %v2163, 42
      %v2169 = vpop.permute.xlu0 %2168
      %vm2170 = vcmask 343040
      %v2171 = vsel %vm2170, %v2165, %v2167
      %v2172 = vsel %vm2170, %v2167, %v2169
      %v2176 = vadd.f32 %v506, %v2165
      %v2177 = vadd.f32 %v508, %v2171
      %v2178 = vadd.f32 %v577, %v2172
      %v2182 = vcombine.low %v2176, %v2177
      %2183 = vrot.lane.b32.xlu0 %v2182, 86
      %v2184 = vpop.permute.xlu0 %2183
      %2185 = vrot.lane.b32.xlu0 %v2178, 86
      %v2186 = vpop.permute.xlu0 %2185
      %v2187 = vrot.slane %v2184, 4
      %v2188 = vrot.slane %v2186, 4
      %v2189 = vsel %vm430, %v2187, %v2188
      %v2190 = vsel %vm735, %v2184, %v2189
      %2193 = vst [vmem:[%s386] sm:$0xcc] %v2190
      %vm2194 = vcmask 519170
      %2195 = vst.msk [vmem:[%s386 + $0x8] sm:$0xc] %vm2194, %v2186
      %p2196 = scmp.lt.s32.totalorder %s22, 1
      %s2197 = scalar_select %p2196, %s22, 1
      %s2198 = smul.addr %s2197, 3
      %s2199 = smul.addr %s2198, 4
      %s2200 = scalar_lea.vmem %s11, %s2199
      // Predicated region
      $region65: #{flow_step_forward.1} parent=63 // pred_check
        %p2201 = pneg %p276
      $region66: #{flow_step_forward.1} parent=63 // pred_check_branch
        %2203 = sbr.rel (%p2201) target = $region68
      $region67: #{flow_step_forward.1} parent=63 // pred_region
        _
      $region68: #{flow_step_forward.1} parent=63 // pred_fallthru
        _
    $region64: #{flow_step_forward.1} parent=5 // pred_fallthru
      _
    %p2204 = scmp.le.s32.totalorder 2, %s17
    // Predicated region
    $region69: #{flow_step_forward.1} parent=5 // pred_check
      %p2205 = pneg %p2204
    $region70: #{flow_step_forward.1} parent=5 // pred_check_branch
      %2207 = sbr.rel (%p2205) target = $region72
    $region71: #{flow_step_forward.1} parent=5 // pred_region
      %s2208 = ssub.s32 %s17, 2
      // Predicated region
      $region73: #{flow_step_forward.1} parent=71 // pred_check
        %p2209 = pneg %p282
      $region74: #{flow_step_forward.1} parent=71 // pred_check_branch
        %2211 = sbr.rel (%p2209) target = $region76
      $region75: #{flow_step_forward.1} parent=71 // pred_region
        %p2212 = scmp.lt.s32.totalorder %s23, 1
        %s2213 = scalar_select %p2212, %s23, 1
        %s2214 = smul.addr %s2213, 3
        %s2215 = smul.addr %s2214, 4
        %s2216 = scalar_lea.vmem %s11, %s2215
      $region76: #{flow_step_forward.1} parent=71 // pred_fallthru
        _
    $region72: #{flow_step_forward.1} parent=5 // pred_fallthru
      _
  $region6: #{flow_step_forward.1} parent=0 // loop_footer
    %s21 = sadd.s32 1, %s17
  $region7: #{flow_step_forward.1} parent=0 // loop_footer_branch
    %16 = sbr.rel target = $region3
  $region8: #{flow_step_forward.1} parent=0 // loop_exit
    _

</llo_original>
